<compile_context>
chip_gen: v6e
topology: v6e:2x2x1
jax: 0.10.0
libtpu: 0.0.40
codegen_flags: <defaults>
</compile_context>

<pallas_src>
import numpy as np
import jax
import jax.numpy as jnp
from jax.experimental import pallas as pl
from jax.experimental.pallas import tpu as pltpu

N_HEAD, D_HEAD, D_MODEL = 4, 8, 32
HD = N_HEAD * D_HEAD                      # 32
QLEN, RLEN, BSZ = 8, 8, 2
NGRP = N_HEAD * BSZ                       # 8 (head, batch) groups
NROW = NGRP * QLEN                        # 64 stacked score rows
SCALE = 1.0 / (D_HEAD ** 0.5)
EPS = 1e-5
NBITS = (RLEN - 1).bit_length()           # 3 rotation stages for RLEN=8

_NT = (((1,), (1,)), ((), ()))            # contract last dims of both: x @ y.T

# consts-slab layout: packed (CROWS, NROW) f32 input
CROWS = 96
_ROT_ROW0 = NROW                          # rows 64:88 -> three 8x8 rotations
_RWB_ROW = NROW + NBITS * RLEN            # 88: r_w_bias (flat, HD lanes)
_RRB_ROW = _RWB_ROW + 1                   # 89: r_r_bias
_GAM_ROW = _RWB_ROW + 2                   # 90: LN gamma
_BET_ROW = _RWB_ROW + 3                   # 91: LN beta


# ------------------------------------------------------------------
# Single fused kernel: projections + rel-attention + exact rel_shift +
#                      softmax + AV + o_net + residual + LayerNorm
# ------------------------------------------------------------------
def _fused_mha_kernel(w_ref, r_ref, wproj_ref, wo_ref, c_ref, o_ref):
    f32 = jnp.float32

    # ---- unpack the packed constants slab -------------------------------
    up64 = c_ref[0:NROW, 0:NROW]                                    # (64, 64)
    rots = [c_ref[_ROT_ROW0 + t * RLEN:_ROT_ROW0 + (t + 1) * RLEN, 0:RLEN]
            for t in range(NBITS)]                                  # 3 x (8, 8)
    rwb = c_ref[_RWB_ROW:_RWB_ROW + 1, 0:HD]                        # (1, 32)
    rrb = c_ref[_RRB_ROW:_RRB_ROW + 1, 0:HD]
    gamma = c_ref[_GAM_ROW:_GAM_ROW + 1, 0:D_MODEL]
    beta = c_ref[_BET_ROW:_BET_ROW + 1, 0:D_MODEL]

    # ---- hoisted iotas / masks (built once, reused everywhere) ----------
    qpos = jax.lax.broadcasted_iota(jnp.int32, (NROW, RLEN), 0) & (QLEN - 1)
    col = jax.lax.broadcasted_iota(jnp.int32, (NROW, RLEN), 1)
    amount = qpos + 1                         # per-row right-rotation (mod RLEN)
    bit_masks = [(amount & (1 << t)) != 0 for t in range(NBITS)]
    keep_z = col <= qpos
    is_zero = col == amount

    # ---- activations: ONE fused qkv + r projection matmul ---------------
    x0 = w_ref[:, 0:D_MODEL]                                        # batch 0 (8, 32)
    x1 = w_ref[:, D_MODEL:2 * D_MODEL]                              # batch 1 (8, 32)
    xr = jnp.concatenate([x0, x1, r_ref[...]], axis=0)              # (24, 32)
    proj = jnp.dot(xr, wproj_ref[...], preferred_element_type=f32)  # (24, 128)

    q_all = proj[0:BSZ * QLEN, 0 * HD:1 * HD]       # (16, 32), row = b*QLEN + i
    k_all = proj[0:BSZ * QLEN, 1 * HD:2 * HD]
    v_all = proj[0:BSZ * QLEN, 2 * HD:3 * HD]
    rh_all = proj[BSZ * QLEN:BSZ * QLEN + RLEN, 3 * HD:4 * HD]      # (8, 32)

    qrw = q_all + rwb                               # q + r_w_bias   (16, 32)
    qrr = q_all + rrb                               # q + r_r_bias   (16, 32)

    # ---- BD: one (16,8)x(8,8)^T dot per head (rh is batch-independent) --
    bd_parts = []
    for h in range(N_HEAD):
        hs = slice(h * D_HEAD, (h + 1) * D_HEAD)
        bd_parts.append(jax.lax.dot_general(qrr[:, hs], rh_all[:, hs], _NT,
                                            preferred_element_type=f32))
    bd = jnp.concatenate(bd_parts, axis=0)          # (64, 8), row = h*16 + b*8 + i

    # ---- exact Transformer-XL rel_shift, batched over all (h, b) --------
    # Target (square case, bit-equal to the torch zero-pad/view trick):
    #   y[i, j] = bd[i, j - i - 1 + RLEN]  for j <= i
    #   y[i, j] = 0                        for j == i + 1
    #   y[i, j] = bd[i + 1, j - i - 2]     for j >  i + 1
    # Step 1: right-rotate row i by (i+1) mod RLEN via conditional permutation
    #         matmuls on the bits of (i+1); step 2: one 64x64 row-up-shift.
    z = bd
    for t in range(NBITS):
        zr = jnp.dot(z, rots[t], preferred_element_type=f32)
        z = jnp.where(bit_masks[t], zr, z)
    z_up = jnp.dot(up64, z, preferred_element_type=f32)             # z_up[r] = z[r+1]
    bd_sh = jnp.where(keep_z, z, jnp.where(is_zero, 0.0, z_up))

    # ---- AC: (q + r_w_bias) . k^T per (head, batch) ----------------------
    ac_parts = []
    for h in range(N_HEAD):
        hs = slice(h * D_HEAD, (h + 1) * D_HEAD)
        qrw_h, k_h = qrw[:, hs], k_all[:, hs]
        for b in range(BSZ):
            bs = slice(b * QLEN, (b + 1) * QLEN)
            ac_parts.append(jax.lax.dot_general(qrw_h[bs, :], k_h[bs, :], _NT,
                                                preferred_element_type=f32))
    ac = jnp.concatenate(ac_parts, axis=0)          # (64, 8), same row order as bd

    # ---- softmax over keys, ONCE on the whole (64, RLEN) stack ----------
    score = (ac + bd_sh) * SCALE
    score = score - jnp.max(score, axis=-1, keepdims=True)
    e = jnp.exp(score)
    p = e / jnp.sum(e, axis=-1, keepdims=True)      # exact divide (accuracy)

    # ---- attention * V per (head, batch), then ONE o_net matmul ---------
    av_rows = []
    for b in range(BSZ):
        chunks = []
        for h in range(N_HEAD):
            gs = slice((h * BSZ + b) * QLEN, (h * BSZ + b + 1) * QLEN)
            v_hb = v_all[b * QLEN:(b + 1) * QLEN, h * D_HEAD:(h + 1) * D_HEAD]
            chunks.append(jnp.dot(p[gs, :], v_hb, preferred_element_type=f32))
        av_rows.append(jnp.concatenate(chunks, axis=1))             # (8, 32)
    av = jnp.concatenate(av_rows, axis=0)                           # (16, 32)

    attn_out = jnp.dot(av, wo_ref[...], preferred_element_type=f32)  # (16, 32)

    # ---- residual + LayerNorm (post-LN), both batches at once -----------
    y = xr[0:BSZ * QLEN, :] + attn_out
    mu = jnp.mean(y, axis=-1, keepdims=True)
    var = jnp.mean(jnp.square(y - mu), axis=-1, keepdims=True)
    y = (y - mu) * jax.lax.rsqrt(var + EPS) * gamma + beta

    o_ref[:, 0:D_MODEL] = y[0:QLEN, :]                   # batch 0
    o_ref[:, D_MODEL:2 * D_MODEL] = y[QLEN:2 * QLEN, :]  # batch 1


# ------------------------------------------------------------------
# Wrapper: one-time weight re-layout + constant packing + single pallas_call
# ------------------------------------------------------------------
def _build_consts(params):
    """(CROWS, NROW) slab: 64x64 row-up-shift, 3 x 8x8 right-rotations,
    r_w_bias / r_r_bias / LN gamma / LN beta rows."""
    assert RLEN & (RLEN - 1) == 0 and QLEN == RLEN, "rel-shift assumes square pow2 len"
    c = np.zeros((CROWS, NROW), np.float32)
    a = np.arange(NROW - 1)
    c[a, a + 1] = 1.0                                   # row-up-shift permutation
    j = np.arange(RLEN)
    for t in range(NBITS):                              # right-rotation by 2**t
        c[_ROT_ROW0 + t * RLEN + j, (j + (1 << t)) % RLEN] = 1.0
    c = jnp.asarray(c)
    c = c.at[_RWB_ROW, 0:HD].set(params["r_w_bias"].reshape(-1))
    c = c.at[_RRB_ROW, 0:HD].set(params["r_r_bias"].reshape(-1))
    c = c.at[_GAM_ROW, 0:D_MODEL].set(params["ln_g"].reshape(-1))
    c = c.at[_BET_ROW, 0:D_MODEL].set(params["ln_b"].reshape(-1))
    return c


def rel_partial_mha_forward(w, r, params):
    qlen, bsz, d_model = w.shape
    rlen = r.shape[0]
    assert (qlen, rlen, bsz, d_model) == (QLEN, RLEN, BSZ, D_MODEL)

    # [Wq|Wk|Wv|Wr] as one (D_MODEL, 4*HD) slab, per-head column blocks.
    wproj = jnp.concatenate([params["qkv"].T, params["r_net"].T], axis=1)
    wo = params["o_net"].T                                           # (HD, D_MODEL)
    consts = _build_consts(params)                                   # (96, 64)

    w2 = w.reshape(qlen, bsz * d_model)      # free reshape -> NO wrapper transpose

    def full(shape):
        nd = len(shape)
        return pl.BlockSpec(shape, lambda i, _nd=nd: (0,) * _nd)

    out2 = pl.pallas_call(
        _fused_mha_kernel,
        out_shape=jax.ShapeDtypeStruct((qlen, bsz * d_model), jnp.float32),
        grid=(1,),
        in_specs=[full((qlen, bsz * d_model)),      # w  (residual + qkv input)
                  full((rlen, d_model)),            # r
                  full((d_model, 4 * HD)),          # [Wq|Wk|Wv|Wr]
                  full((HD, d_model)),              # Wo
                  full((CROWS, NROW))],             # packed constants
        out_specs=full((qlen, bsz * d_model)),
        compiler_params=pltpu.CompilerParams(dimension_semantics=("arbitrary",)),
    )(w2, r, wproj, wo, consts)

    return out2.reshape(qlen, bsz, d_model)          # free reshape -> [qlen, bsz, dm]


# ------------------------------------------------------------------
# Pure-JAX reference mirroring the PyTorch forward (for verification)
# ------------------------------------------------------------------
def reference(w, r, params):
    Wqkv, Wr, Wo = params["qkv"], params["r_net"], params["o_net"]
    rwb, rrb = params["r_w_bias"], params["r_r_bias"]
    g, b_ = params["ln_g"][0], params["ln_b"][0]
    qlen, bsz, _ = w.shape
    rlen = r.shape[0]
    hi = jax.lax.Precision.HIGHEST

    w_heads = jnp.einsum("ibm,om->ibo", w, Wqkv, precision=hi)
    r_head_k = jnp.einsum("rm,om->ro", r, Wr, precision=hi).reshape(rlen, N_HEAD, D_HEAD)
    w_heads = w_heads.reshape(qlen, bsz, 3, N_HEAD, D_HEAD)
    q_, k_, v_ = w_heads[:, :, 0], w_heads[:, :, 1], w_heads[:, :, 2]

    AC = jnp.einsum("ibnd,jbnd->ijbn", q_ + rwb, k_, precision=hi)
    BD = jnp.einsum("ibnd,jnd->ijbn", q_ + rrb, r_head_k, precision=hi)
    zp = jnp.zeros((qlen, 1, bsz, N_HEAD), BD.dtype)
    BDp = jnp.concatenate([zp, BD], axis=1).reshape(rlen + 1, qlen, bsz, N_HEAD)
    BD = BDp[1:].reshape(qlen, rlen, bsz, N_HEAD)

    score = (AC + BD) * SCALE
    prob = jax.nn.softmax(score, axis=1)
    av = jnp.einsum("ijbn,jbnd->ibnd", prob, v_, precision=hi)
    av = av.reshape(qlen, bsz, N_HEAD * D_HEAD)
    attn_out = jnp.einsum("ibo,mo->ibm", av, Wo, precision=hi)
    y = w + attn_out
    mean = y.mean(-1, keepdims=True)
    var = ((y - mean) ** 2).mean(-1, keepdims=True)
    return (y - mean) / jnp.sqrt(var + EPS) * g + b_


if __name__ == "__main__":
    key = jax.random.PRNGKey(0)
    keys = jax.random.split(key, 7)
    w = jax.random.normal(keys[0], (QLEN, BSZ, D_MODEL), jnp.float32)
    r = jax.random.normal(keys[1], (RLEN, D_MODEL), jnp.float32)
    params = {
        "qkv": 0.05 * jax.random.normal(keys[2], (3 * HD, D_MODEL), jnp.float32),
        "r_net": 0.05 * jax.random.normal(keys[3], (HD, D_MODEL), jnp.float32),
        "o_net": 0.05 * jax.random.normal(keys[4], (D_MODEL, HD), jnp.float32),
        "r_w_bias": 0.05 * jax.random.normal(keys[5], (N_HEAD, D_HEAD), jnp.float32),
        "r_r_bias": 0.05 * jax.random.normal(keys[6], (N_HEAD, D_HEAD), jnp.float32),
        "ln_g": jnp.ones((1, D_MODEL), jnp.float32),
        "ln_b": jnp.zeros((1, D_MODEL), jnp.float32),
    }

    fwd = jax.jit(rel_partial_mha_forward)
    out = jax.block_until_ready(fwd(w, r, params))
    assert out.shape == (QLEN, BSZ, D_MODEL)

    ref = reference(w, r, params)
    err = float(jnp.max(jnp.abs(out - ref)))
    assert jnp.allclose(out, ref, atol=2e-3, rtol=2e-3), f"max abs err {err}"
    print("KERNEL_OK")
</pallas_src>

<mosaic_0001>
module attributes {stable_mosaic.version = 11 : i64} {
  func.func @_fused_mha_kernel(%arg0: i32, %arg1: memref<8x64xf32, #tpu.memory_space<vmem>>, %arg2: memref<8x32xf32, #tpu.memory_space<vmem>>, %arg3: memref<32x128xf32, #tpu.memory_space<vmem>>, %arg4: memref<32x32xf32, #tpu.memory_space<vmem>>, %arg5: memref<96x64xf32, #tpu.memory_space<vmem>>, %arg6: memref<8x64xf32, #tpu.memory_space<vmem>>) attributes {dimension_semantics = [#tpu.dimension_semantics<arbitrary>], iteration_bounds = array<i64: 1>, scalar_prefetch = 0 : i64, scratch_operands = 0 : i64, tpu.core_type = #tpu.core_type<tc>, window_params = [{pipeline_mode = #tpu.pipeline_mode<synchronous>, transform_indices = @transform_0, window_bounds = array<i64: 8, 64>}, {pipeline_mode = #tpu.pipeline_mode<synchronous>, transform_indices = @transform_1, window_bounds = array<i64: 8, 32>}, {pipeline_mode = #tpu.pipeline_mode<synchronous>, transform_indices = @transform_2, window_bounds = array<i64: 32, 128>}, {pipeline_mode = #tpu.pipeline_mode<synchronous>, transform_indices = @transform_3, window_bounds = array<i64: 32, 32>}, {pipeline_mode = #tpu.pipeline_mode<synchronous>, transform_indices = @transform_4, window_bounds = array<i64: 96, 64>}, {pipeline_mode = #tpu.pipeline_mode<synchronous>, transform_indices = @transform_5, window_bounds = array<i64: 8, 64>}]} {
    %c0 = arith.constant 0 : index
    %c0_0 = arith.constant 0 : index
    %0 = vector.load %arg5[%c0, %c0_0] : memref<96x64xf32, #tpu.memory_space<vmem>>, vector<64x64xf32>
    %c64 = arith.constant 64 : index
    %c0_1 = arith.constant 0 : index
    %1 = vector.load %arg5[%c64, %c0_1] : memref<96x64xf32, #tpu.memory_space<vmem>>, vector<8x8xf32>
    %c72 = arith.constant 72 : index
    %c0_2 = arith.constant 0 : index
    %2 = vector.load %arg5[%c72, %c0_2] : memref<96x64xf32, #tpu.memory_space<vmem>>, vector<8x8xf32>
    %c80 = arith.constant 80 : index
    %c0_3 = arith.constant 0 : index
    %3 = vector.load %arg5[%c80, %c0_3] : memref<96x64xf32, #tpu.memory_space<vmem>>, vector<8x8xf32>
    %c88 = arith.constant 88 : index
    %c0_4 = arith.constant 0 : index
    %4 = vector.load %arg5[%c88, %c0_4] : memref<96x64xf32, #tpu.memory_space<vmem>>, vector<1x32xf32>
    %c89 = arith.constant 89 : index
    %c0_5 = arith.constant 0 : index
    %5 = vector.load %arg5[%c89, %c0_5] : memref<96x64xf32, #tpu.memory_space<vmem>>, vector<1x32xf32>
    %c90 = arith.constant 90 : index
    %c0_6 = arith.constant 0 : index
    %6 = vector.load %arg5[%c90, %c0_6] : memref<96x64xf32, #tpu.memory_space<vmem>>, vector<1x32xf32>
    %c91 = arith.constant 91 : index
    %c0_7 = arith.constant 0 : index
    %7 = vector.load %arg5[%c91, %c0_7] : memref<96x64xf32, #tpu.memory_space<vmem>>, vector<1x32xf32>
    %8 = tpu.iota {dimensions = array<i32: 0>} : vector<64x8xi32>
    %c7_i32 = arith.constant 7 : i32
    %9 = vector.broadcast %c7_i32 : i32 to vector<64x8xi32>
    %10 = arith.andi %8, %9 : vector<64x8xi32>
    %11 = tpu.iota {dimensions = array<i32: 1>} : vector<64x8xi32>
    %c1_i32 = arith.constant 1 : i32
    %12 = vector.broadcast %c1_i32 : i32 to vector<64x8xi32>
    %13 = arith.addi %10, %12 : vector<64x8xi32>
    %c1_i32_8 = arith.constant 1 : i32
    %14 = vector.broadcast %c1_i32_8 : i32 to vector<64x8xi32>
    %15 = arith.andi %13, %14 : vector<64x8xi32>
    %c0_i32 = arith.constant 0 : i32
    %16 = vector.broadcast %c0_i32 : i32 to vector<64x8xi32>
    %17 = arith.cmpi ne, %15, %16 : vector<64x8xi32>
    %c2_i32 = arith.constant 2 : i32
    %18 = vector.broadcast %c2_i32 : i32 to vector<64x8xi32>
    %19 = arith.andi %13, %18 : vector<64x8xi32>
    %c0_i32_9 = arith.constant 0 : i32
    %20 = vector.broadcast %c0_i32_9 : i32 to vector<64x8xi32>
    %21 = arith.cmpi ne, %19, %20 : vector<64x8xi32>
    %c4_i32 = arith.constant 4 : i32
    %22 = vector.broadcast %c4_i32 : i32 to vector<64x8xi32>
    %23 = arith.andi %13, %22 : vector<64x8xi32>
    %c0_i32_10 = arith.constant 0 : i32
    %24 = vector.broadcast %c0_i32_10 : i32 to vector<64x8xi32>
    %25 = arith.cmpi ne, %23, %24 : vector<64x8xi32>
    %26 = arith.cmpi sle, %11, %10 : vector<64x8xi32>
    %27 = arith.cmpi eq, %11, %13 : vector<64x8xi32>
    %c0_11 = arith.constant 0 : index
    %c0_12 = arith.constant 0 : index
    %28 = vector.load %arg1[%c0_11, %c0_12] : memref<8x64xf32, #tpu.memory_space<vmem>>, vector<8x32xf32>
    %c0_13 = arith.constant 0 : index
    %c32 = arith.constant 32 : index
    %29 = vector.load %arg1[%c0_13, %c32] : memref<8x64xf32, #tpu.memory_space<vmem>>, vector<8x32xf32>
    %c0_14 = arith.constant 0 : index
    %c0_15 = arith.constant 0 : index
    %30 = vector.load %arg2[%c0_14, %c0_15] : memref<8x32xf32, #tpu.memory_space<vmem>>, vector<8x32xf32>
    %31 = tpu.concatenate %28, %29, %30 in 0 : vector<8x32xf32>, vector<8x32xf32>, vector<8x32xf32> -> vector<24x32xf32>
    %c0_16 = arith.constant 0 : index
    %c0_17 = arith.constant 0 : index
    %32 = vector.load %arg3[%c0_16, %c0_17] : memref<32x128xf32, #tpu.memory_space<vmem>>, vector<32x128xf32>
    %cst = arith.constant dense<0.000000e+00> : vector<24x128xf32>
    %33 = tpu.matmul %31, %32, %cst {dimension_numbers = #tpu.dot_dimension_numbers<[1], [0], [0], [1], [0, 0, 1, 1], [], []>} : vector<24x32xf32>, vector<32x128xf32>, vector<24x128xf32> -> vector<24x128xf32>
    %34 = vector.extract_strided_slice %33 {offsets = [0, 0], sizes = [16, 32], strides = [1, 1]} : vector<24x128xf32> to vector<16x32xf32>
    %35 = vector.extract_strided_slice %33 {offsets = [0, 32], sizes = [16, 32], strides = [1, 1]} : vector<24x128xf32> to vector<16x32xf32>
    %36 = vector.extract_strided_slice %33 {offsets = [0, 64], sizes = [16, 32], strides = [1, 1]} : vector<24x128xf32> to vector<16x32xf32>
    %37 = vector.extract_strided_slice %33 {offsets = [16, 96], sizes = [8, 32], strides = [1, 1]} : vector<24x128xf32> to vector<8x32xf32>
    %38 = vector.broadcast %4 : vector<1x32xf32> to vector<16x32xf32>
    %39 = arith.addf %34, %38 : vector<16x32xf32>
    %40 = vector.broadcast %5 : vector<1x32xf32> to vector<16x32xf32>
    %41 = arith.addf %34, %40 : vector<16x32xf32>
    %42 = vector.extract_strided_slice %41 {offsets = [0, 0], sizes = [16, 8], strides = [1, 1]} : vector<16x32xf32> to vector<16x8xf32>
    %43 = vector.extract_strided_slice %37 {offsets = [0, 0], sizes = [8, 8], strides = [1, 1]} : vector<8x32xf32> to vector<8x8xf32>
    %cst_18 = arith.constant dense<0.000000e+00> : vector<16x8xf32>
    %44 = tpu.matmul %42, %43, %cst_18 {dimension_numbers = #tpu.dot_dimension_numbers<[1], [1], [0], [0], [0, 0, 1, 0], [], []>} : vector<16x8xf32>, vector<8x8xf32>, vector<16x8xf32> -> vector<16x8xf32>
    %45 = vector.extract_strided_slice %41 {offsets = [0, 8], sizes = [16, 8], strides = [1, 1]} : vector<16x32xf32> to vector<16x8xf32>
    %46 = vector.extract_strided_slice %37 {offsets = [0, 8], sizes = [8, 8], strides = [1, 1]} : vector<8x32xf32> to vector<8x8xf32>
    %cst_19 = arith.constant dense<0.000000e+00> : vector<16x8xf32>
    %47 = tpu.matmul %45, %46, %cst_19 {dimension_numbers = #tpu.dot_dimension_numbers<[1], [1], [0], [0], [0, 0, 1, 0], [], []>} : vector<16x8xf32>, vector<8x8xf32>, vector<16x8xf32> -> vector<16x8xf32>
    %48 = vector.extract_strided_slice %41 {offsets = [0, 16], sizes = [16, 8], strides = [1, 1]} : vector<16x32xf32> to vector<16x8xf32>
    %49 = vector.extract_strided_slice %37 {offsets = [0, 16], sizes = [8, 8], strides = [1, 1]} : vector<8x32xf32> to vector<8x8xf32>
    %cst_20 = arith.constant dense<0.000000e+00> : vector<16x8xf32>
    %50 = tpu.matmul %48, %49, %cst_20 {dimension_numbers = #tpu.dot_dimension_numbers<[1], [1], [0], [0], [0, 0, 1, 0], [], []>} : vector<16x8xf32>, vector<8x8xf32>, vector<16x8xf32> -> vector<16x8xf32>
    %51 = vector.extract_strided_slice %41 {offsets = [0, 24], sizes = [16, 8], strides = [1, 1]} : vector<16x32xf32> to vector<16x8xf32>
    %52 = vector.extract_strided_slice %37 {offsets = [0, 24], sizes = [8, 8], strides = [1, 1]} : vector<8x32xf32> to vector<8x8xf32>
    %cst_21 = arith.constant dense<0.000000e+00> : vector<16x8xf32>
    %53 = tpu.matmul %51, %52, %cst_21 {dimension_numbers = #tpu.dot_dimension_numbers<[1], [1], [0], [0], [0, 0, 1, 0], [], []>} : vector<16x8xf32>, vector<8x8xf32>, vector<16x8xf32> -> vector<16x8xf32>
    %54 = tpu.concatenate %44, %47, %50, %53 in 0 : vector<16x8xf32>, vector<16x8xf32>, vector<16x8xf32>, vector<16x8xf32> -> vector<64x8xf32>
    %cst_22 = arith.constant dense<0.000000e+00> : vector<64x8xf32>
    %55 = tpu.matmul %54, %1, %cst_22 {dimension_numbers = #tpu.dot_dimension_numbers<[1], [0], [0], [1], [0, 0, 1, 1], [], []>} : vector<64x8xf32>, vector<8x8xf32>, vector<64x8xf32> -> vector<64x8xf32>
    %56 = arith.select %17, %55, %54 : vector<64x8xi1>, vector<64x8xf32>
    %cst_23 = arith.constant dense<0.000000e+00> : vector<64x8xf32>
    %57 = tpu.matmul %56, %2, %cst_23 {dimension_numbers = #tpu.dot_dimension_numbers<[1], [0], [0], [1], [0, 0, 1, 1], [], []>} : vector<64x8xf32>, vector<8x8xf32>, vector<64x8xf32> -> vector<64x8xf32>
    %58 = arith.select %21, %57, %56 : vector<64x8xi1>, vector<64x8xf32>
    %cst_24 = arith.constant dense<0.000000e+00> : vector<64x8xf32>
    %59 = tpu.matmul %58, %3, %cst_24 {dimension_numbers = #tpu.dot_dimension_numbers<[1], [0], [0], [1], [0, 0, 1, 1], [], []>} : vector<64x8xf32>, vector<8x8xf32>, vector<64x8xf32> -> vector<64x8xf32>
    %60 = arith.select %25, %59, %58 : vector<64x8xi1>, vector<64x8xf32>
    %cst_25 = arith.constant dense<0.000000e+00> : vector<64x8xf32>
    %61 = tpu.matmul %0, %60, %cst_25 {dimension_numbers = #tpu.dot_dimension_numbers<[1], [0], [0], [1], [0, 0, 1, 1], [], []>} : vector<64x64xf32>, vector<64x8xf32>, vector<64x8xf32> -> vector<64x8xf32>
    %cst_26 = arith.constant 0.000000e+00 : f32
    %62 = vector.broadcast %cst_26 : f32 to vector<64x8xf32>
    %63 = arith.select %27, %62, %61 : vector<64x8xi1>, vector<64x8xf32>
    %64 = arith.select %26, %60, %63 : vector<64x8xi1>, vector<64x8xf32>
    %65 = vector.extract_strided_slice %39 {offsets = [0, 0], sizes = [16, 8], strides = [1, 1]} : vector<16x32xf32> to vector<16x8xf32>
    %66 = vector.extract_strided_slice %35 {offsets = [0, 0], sizes = [16, 8], strides = [1, 1]} : vector<16x32xf32> to vector<16x8xf32>
    %67 = vector.extract_strided_slice %65 {offsets = [0, 0], sizes = [8, 8], strides = [1, 1]} : vector<16x8xf32> to vector<8x8xf32>
    %68 = vector.extract_strided_slice %66 {offsets = [0, 0], sizes = [8, 8], strides = [1, 1]} : vector<16x8xf32> to vector<8x8xf32>
    %cst_27 = arith.constant dense<0.000000e+00> : vector<8x8xf32>
    %69 = tpu.matmul %67, %68, %cst_27 {dimension_numbers = #tpu.dot_dimension_numbers<[1], [1], [0], [0], [0, 0, 1, 0], [], []>} : vector<8x8xf32>, vector<8x8xf32>, vector<8x8xf32> -> vector<8x8xf32>
    %70 = vector.extract_strided_slice %65 {offsets = [8, 0], sizes = [8, 8], strides = [1, 1]} : vector<16x8xf32> to vector<8x8xf32>
    %71 = vector.extract_strided_slice %66 {offsets = [8, 0], sizes = [8, 8], strides = [1, 1]} : vector<16x8xf32> to vector<8x8xf32>
    %cst_28 = arith.constant dense<0.000000e+00> : vector<8x8xf32>
    %72 = tpu.matmul %70, %71, %cst_28 {dimension_numbers = #tpu.dot_dimension_numbers<[1], [1], [0], [0], [0, 0, 1, 0], [], []>} : vector<8x8xf32>, vector<8x8xf32>, vector<8x8xf32> -> vector<8x8xf32>
    %73 = vector.extract_strided_slice %39 {offsets = [0, 8], sizes = [16, 8], strides = [1, 1]} : vector<16x32xf32> to vector<16x8xf32>
    %74 = vector.extract_strided_slice %35 {offsets = [0, 8], sizes = [16, 8], strides = [1, 1]} : vector<16x32xf32> to vector<16x8xf32>
    %75 = vector.extract_strided_slice %73 {offsets = [0, 0], sizes = [8, 8], strides = [1, 1]} : vector<16x8xf32> to vector<8x8xf32>
    %76 = vector.extract_strided_slice %74 {offsets = [0, 0], sizes = [8, 8], strides = [1, 1]} : vector<16x8xf32> to vector<8x8xf32>
    %cst_29 = arith.constant dense<0.000000e+00> : vector<8x8xf32>
    %77 = tpu.matmul %75, %76, %cst_29 {dimension_numbers = #tpu.dot_dimension_numbers<[1], [1], [0], [0], [0, 0, 1, 0], [], []>} : vector<8x8xf32>, vector<8x8xf32>, vector<8x8xf32> -> vector<8x8xf32>
    %78 = vector.extract_strided_slice %73 {offsets = [8, 0], sizes = [8, 8], strides = [1, 1]} : vector<16x8xf32> to vector<8x8xf32>
    %79 = vector.extract_strided_slice %74 {offsets = [8, 0], sizes = [8, 8], strides = [1, 1]} : vector<16x8xf32> to vector<8x8xf32>
    %cst_30 = arith.constant dense<0.000000e+00> : vector<8x8xf32>
    %80 = tpu.matmul %78, %79, %cst_30 {dimension_numbers = #tpu.dot_dimension_numbers<[1], [1], [0], [0], [0, 0, 1, 0], [], []>} : vector<8x8xf32>, vector<8x8xf32>, vector<8x8xf32> -> vector<8x8xf32>
    %81 = vector.extract_strided_slice %39 {offsets = [0, 16], sizes = [16, 8], strides = [1, 1]} : vector<16x32xf32> to vector<16x8xf32>
    %82 = vector.extract_strided_slice %35 {offsets = [0, 16], sizes = [16, 8], strides = [1, 1]} : vector<16x32xf32> to vector<16x8xf32>
    %83 = vector.extract_strided_slice %81 {offsets = [0, 0], sizes = [8, 8], strides = [1, 1]} : vector<16x8xf32> to vector<8x8xf32>
    %84 = vector.extract_strided_slice %82 {offsets = [0, 0], sizes = [8, 8], strides = [1, 1]} : vector<16x8xf32> to vector<8x8xf32>
    %cst_31 = arith.constant dense<0.000000e+00> : vector<8x8xf32>
    %85 = tpu.matmul %83, %84, %cst_31 {dimension_numbers = #tpu.dot_dimension_numbers<[1], [1], [0], [0], [0, 0, 1, 0], [], []>} : vector<8x8xf32>, vector<8x8xf32>, vector<8x8xf32> -> vector<8x8xf32>
    %86 = vector.extract_strided_slice %81 {offsets = [8, 0], sizes = [8, 8], strides = [1, 1]} : vector<16x8xf32> to vector<8x8xf32>
    %87 = vector.extract_strided_slice %82 {offsets = [8, 0], sizes = [8, 8], strides = [1, 1]} : vector<16x8xf32> to vector<8x8xf32>
    %cst_32 = arith.constant dense<0.000000e+00> : vector<8x8xf32>
    %88 = tpu.matmul %86, %87, %cst_32 {dimension_numbers = #tpu.dot_dimension_numbers<[1], [1], [0], [0], [0, 0, 1, 0], [], []>} : vector<8x8xf32>, vector<8x8xf32>, vector<8x8xf32> -> vector<8x8xf32>
    %89 = vector.extract_strided_slice %39 {offsets = [0, 24], sizes = [16, 8], strides = [1, 1]} : vector<16x32xf32> to vector<16x8xf32>
    %90 = vector.extract_strided_slice %35 {offsets = [0, 24], sizes = [16, 8], strides = [1, 1]} : vector<16x32xf32> to vector<16x8xf32>
    %91 = vector.extract_strided_slice %89 {offsets = [0, 0], sizes = [8, 8], strides = [1, 1]} : vector<16x8xf32> to vector<8x8xf32>
    %92 = vector.extract_strided_slice %90 {offsets = [0, 0], sizes = [8, 8], strides = [1, 1]} : vector<16x8xf32> to vector<8x8xf32>
    %cst_33 = arith.constant dense<0.000000e+00> : vector<8x8xf32>
    %93 = tpu.matmul %91, %92, %cst_33 {dimension_numbers = #tpu.dot_dimension_numbers<[1], [1], [0], [0], [0, 0, 1, 0], [], []>} : vector<8x8xf32>, vector<8x8xf32>, vector<8x8xf32> -> vector<8x8xf32>
    %94 = vector.extract_strided_slice %89 {offsets = [8, 0], sizes = [8, 8], strides = [1, 1]} : vector<16x8xf32> to vector<8x8xf32>
    %95 = vector.extract_strided_slice %90 {offsets = [8, 0], sizes = [8, 8], strides = [1, 1]} : vector<16x8xf32> to vector<8x8xf32>
    %cst_34 = arith.constant dense<0.000000e+00> : vector<8x8xf32>
    %96 = tpu.matmul %94, %95, %cst_34 {dimension_numbers = #tpu.dot_dimension_numbers<[1], [1], [0], [0], [0, 0, 1, 0], [], []>} : vector<8x8xf32>, vector<8x8xf32>, vector<8x8xf32> -> vector<8x8xf32>
    %97 = tpu.concatenate %69, %72, %77, %80, %85, %88, %93, %96 in 0 : vector<8x8xf32>, vector<8x8xf32>, vector<8x8xf32>, vector<8x8xf32>, vector<8x8xf32>, vector<8x8xf32>, vector<8x8xf32>, vector<8x8xf32> -> vector<64x8xf32>
    %98 = arith.addf %97, %64 : vector<64x8xf32>
    %cst_35 = arith.constant 0.353553385 : f32
    %99 = vector.broadcast %cst_35 : f32 to vector<64x8xf32>
    %100 = arith.mulf %98, %99 : vector<64x8xf32>
    %cst_36 = arith.constant dense<0xFF800000> : vector<64xf32>
    %101 = vector.multi_reduction <maximumf>, %100, %cst_36 [1] : vector<64x8xf32> to vector<64xf32>
    %102 = vector.shape_cast %101 : vector<64xf32> to vector<64x1xf32>
    %103 = vector.broadcast %102 : vector<64x1xf32> to vector<64x8xf32>
    %104 = arith.subf %100, %103 : vector<64x8xf32>
    %105 = math.exp %104 : vector<64x8xf32>
    %cst_37 = arith.constant dense<0.000000e+00> : vector<64xf32>
    %106 = vector.multi_reduction <add>, %105, %cst_37 [1] : vector<64x8xf32> to vector<64xf32>
    %107 = vector.shape_cast %106 : vector<64xf32> to vector<64x1xf32>
    %108 = vector.broadcast %107 : vector<64x1xf32> to vector<64x8xf32>
    %109 = arith.divf %105, %108 : vector<64x8xf32>
    %110 = vector.extract_strided_slice %36 {offsets = [0, 0], sizes = [8, 8], strides = [1, 1]} : vector<16x32xf32> to vector<8x8xf32>
    %111 = vector.extract_strided_slice %109 {offsets = [0, 0], sizes = [8, 8], strides = [1, 1]} : vector<64x8xf32> to vector<8x8xf32>
    %cst_38 = arith.constant dense<0.000000e+00> : vector<8x8xf32>
    %112 = tpu.matmul %111, %110, %cst_38 {dimension_numbers = #tpu.dot_dimension_numbers<[1], [0], [0], [1], [0, 0, 1, 1], [], []>} : vector<8x8xf32>, vector<8x8xf32>, vector<8x8xf32> -> vector<8x8xf32>
    %113 = vector.extract_strided_slice %36 {offsets = [0, 8], sizes = [8, 8], strides = [1, 1]} : vector<16x32xf32> to vector<8x8xf32>
    %114 = vector.extract_strided_slice %109 {offsets = [16, 0], sizes = [8, 8], strides = [1, 1]} : vector<64x8xf32> to vector<8x8xf32>
    %cst_39 = arith.constant dense<0.000000e+00> : vector<8x8xf32>
    %115 = tpu.matmul %114, %113, %cst_39 {dimension_numbers = #tpu.dot_dimension_numbers<[1], [0], [0], [1], [0, 0, 1, 1], [], []>} : vector<8x8xf32>, vector<8x8xf32>, vector<8x8xf32> -> vector<8x8xf32>
    %116 = vector.extract_strided_slice %36 {offsets = [0, 16], sizes = [8, 8], strides = [1, 1]} : vector<16x32xf32> to vector<8x8xf32>
    %117 = vector.extract_strided_slice %109 {offsets = [32, 0], sizes = [8, 8], strides = [1, 1]} : vector<64x8xf32> to vector<8x8xf32>
    %cst_40 = arith.constant dense<0.000000e+00> : vector<8x8xf32>
    %118 = tpu.matmul %117, %116, %cst_40 {dimension_numbers = #tpu.dot_dimension_numbers<[1], [0], [0], [1], [0, 0, 1, 1], [], []>} : vector<8x8xf32>, vector<8x8xf32>, vector<8x8xf32> -> vector<8x8xf32>
    %119 = vector.extract_strided_slice %36 {offsets = [0, 24], sizes = [8, 8], strides = [1, 1]} : vector<16x32xf32> to vector<8x8xf32>
    %120 = vector.extract_strided_slice %109 {offsets = [48, 0], sizes = [8, 8], strides = [1, 1]} : vector<64x8xf32> to vector<8x8xf32>
    %cst_41 = arith.constant dense<0.000000e+00> : vector<8x8xf32>
    %121 = tpu.matmul %120, %119, %cst_41 {dimension_numbers = #tpu.dot_dimension_numbers<[1], [0], [0], [1], [0, 0, 1, 1], [], []>} : vector<8x8xf32>, vector<8x8xf32>, vector<8x8xf32> -> vector<8x8xf32>
    %122 = tpu.concatenate %112, %115, %118, %121 in 1 : vector<8x8xf32>, vector<8x8xf32>, vector<8x8xf32>, vector<8x8xf32> -> vector<8x32xf32>
    %123 = vector.extract_strided_slice %36 {offsets = [8, 0], sizes = [8, 8], strides = [1, 1]} : vector<16x32xf32> to vector<8x8xf32>
    %124 = vector.extract_strided_slice %109 {offsets = [8, 0], sizes = [8, 8], strides = [1, 1]} : vector<64x8xf32> to vector<8x8xf32>
    %cst_42 = arith.constant dense<0.000000e+00> : vector<8x8xf32>
    %125 = tpu.matmul %124, %123, %cst_42 {dimension_numbers = #tpu.dot_dimension_numbers<[1], [0], [0], [1], [0, 0, 1, 1], [], []>} : vector<8x8xf32>, vector<8x8xf32>, vector<8x8xf32> -> vector<8x8xf32>
    %126 = vector.extract_strided_slice %36 {offsets = [8, 8], sizes = [8, 8], strides = [1, 1]} : vector<16x32xf32> to vector<8x8xf32>
    %127 = vector.extract_strided_slice %109 {offsets = [24, 0], sizes = [8, 8], strides = [1, 1]} : vector<64x8xf32> to vector<8x8xf32>
    %cst_43 = arith.constant dense<0.000000e+00> : vector<8x8xf32>
    %128 = tpu.matmul %127, %126, %cst_43 {dimension_numbers = #tpu.dot_dimension_numbers<[1], [0], [0], [1], [0, 0, 1, 1], [], []>} : vector<8x8xf32>, vector<8x8xf32>, vector<8x8xf32> -> vector<8x8xf32>
    %129 = vector.extract_strided_slice %36 {offsets = [8, 16], sizes = [8, 8], strides = [1, 1]} : vector<16x32xf32> to vector<8x8xf32>
    %130 = vector.extract_strided_slice %109 {offsets = [40, 0], sizes = [8, 8], strides = [1, 1]} : vector<64x8xf32> to vector<8x8xf32>
    %cst_44 = arith.constant dense<0.000000e+00> : vector<8x8xf32>
    %131 = tpu.matmul %130, %129, %cst_44 {dimension_numbers = #tpu.dot_dimension_numbers<[1], [0], [0], [1], [0, 0, 1, 1], [], []>} : vector<8x8xf32>, vector<8x8xf32>, vector<8x8xf32> -> vector<8x8xf32>
    %132 = vector.extract_strided_slice %36 {offsets = [8, 24], sizes = [8, 8], strides = [1, 1]} : vector<16x32xf32> to vector<8x8xf32>
    %133 = vector.extract_strided_slice %109 {offsets = [56, 0], sizes = [8, 8], strides = [1, 1]} : vector<64x8xf32> to vector<8x8xf32>
    %cst_45 = arith.constant dense<0.000000e+00> : vector<8x8xf32>
    %134 = tpu.matmul %133, %132, %cst_45 {dimension_numbers = #tpu.dot_dimension_numbers<[1], [0], [0], [1], [0, 0, 1, 1], [], []>} : vector<8x8xf32>, vector<8x8xf32>, vector<8x8xf32> -> vector<8x8xf32>
    %135 = tpu.concatenate %125, %128, %131, %134 in 1 : vector<8x8xf32>, vector<8x8xf32>, vector<8x8xf32>, vector<8x8xf32> -> vector<8x32xf32>
    %136 = tpu.concatenate %122, %135 in 0 : vector<8x32xf32>, vector<8x32xf32> -> vector<16x32xf32>
    %c0_46 = arith.constant 0 : index
    %c0_47 = arith.constant 0 : index
    %137 = vector.load %arg4[%c0_46, %c0_47] : memref<32x32xf32, #tpu.memory_space<vmem>>, vector<32x32xf32>
    %cst_48 = arith.constant dense<0.000000e+00> : vector<16x32xf32>
    %138 = tpu.matmul %136, %137, %cst_48 {dimension_numbers = #tpu.dot_dimension_numbers<[1], [0], [0], [1], [0, 0, 1, 1], [], []>} : vector<16x32xf32>, vector<32x32xf32>, vector<16x32xf32> -> vector<16x32xf32>
    %139 = vector.extract_strided_slice %31 {offsets = [0, 0], sizes = [16, 32], strides = [1, 1]} : vector<24x32xf32> to vector<16x32xf32>
    %140 = arith.addf %139, %138 : vector<16x32xf32>
    %cst_49 = arith.constant dense<0.000000e+00> : vector<16xf32>
    %141 = vector.multi_reduction <add>, %140, %cst_49 [1] : vector<16x32xf32> to vector<16xf32>
    %142 = vector.shape_cast %141 : vector<16xf32> to vector<16x1xf32>
    %cst_50 = arith.constant 3.200000e+01 : f32
    %143 = vector.broadcast %cst_50 : f32 to vector<16x1xf32>
    %144 = arith.divf %142, %143 : vector<16x1xf32>
    %145 = vector.broadcast %144 : vector<16x1xf32> to vector<16x32xf32>
    %146 = arith.subf %140, %145 : vector<16x32xf32>
    %147 = arith.mulf %146, %146 : vector<16x32xf32>
    %cst_51 = arith.constant dense<0.000000e+00> : vector<16xf32>
    %148 = vector.multi_reduction <add>, %147, %cst_51 [1] : vector<16x32xf32> to vector<16xf32>
    %149 = vector.shape_cast %148 : vector<16xf32> to vector<16x1xf32>
    %cst_52 = arith.constant 3.200000e+01 : f32
    %150 = vector.broadcast %cst_52 : f32 to vector<16x1xf32>
    %151 = arith.divf %149, %150 : vector<16x1xf32>
    %152 = vector.broadcast %144 : vector<16x1xf32> to vector<16x32xf32>
    %153 = arith.subf %140, %152 : vector<16x32xf32>
    %cst_53 = arith.constant 9.99999974E-6 : f32
    %154 = vector.broadcast %cst_53 : f32 to vector<16x1xf32>
    %155 = arith.addf %151, %154 : vector<16x1xf32>
    %156 = math.rsqrt %155 : vector<16x1xf32>
    %157 = vector.broadcast %156 : vector<16x1xf32> to vector<16x32xf32>
    %158 = arith.mulf %153, %157 : vector<16x32xf32>
    %159 = vector.broadcast %6 : vector<1x32xf32> to vector<16x32xf32>
    %160 = arith.mulf %158, %159 : vector<16x32xf32>
    %161 = vector.broadcast %7 : vector<1x32xf32> to vector<16x32xf32>
    %162 = arith.addf %160, %161 : vector<16x32xf32>
    %163 = vector.extract_strided_slice %162 {offsets = [0, 0], sizes = [8, 32], strides = [1, 1]} : vector<16x32xf32> to vector<8x32xf32>
    %c0_54 = arith.constant 0 : index
    %c0_55 = arith.constant 0 : index
    %164 = vector.load %arg6[%c0_54, %c0_55] : memref<8x64xf32, #tpu.memory_space<vmem>>, vector<8x32xf32>
    tpu.vector_store %arg6[%c0_54, %c0_55], %163 {strides = array<i32>} : memref<8x64xf32, #tpu.memory_space<vmem>>, vector<8x32xf32>,
    %165 = vector.extract_strided_slice %162 {offsets = [8, 0], sizes = [8, 32], strides = [1, 1]} : vector<16x32xf32> to vector<8x32xf32>
    %c0_56 = arith.constant 0 : index
    %c32_57 = arith.constant 32 : index
    %166 = vector.load %arg6[%c0_56, %c32_57] : memref<8x64xf32, #tpu.memory_space<vmem>>, vector<8x32xf32>
    tpu.vector_store %arg6[%c0_56, %c32_57], %165 {strides = array<i32>} : memref<8x64xf32, #tpu.memory_space<vmem>>, vector<8x32xf32>,
    return
  }
  func.func @transform_0(%arg0: i32) -> (i32, i32) {
    %c0_i32 = arith.constant 0 : i32
    %c0_i32_0 = arith.constant 0 : i32
    %c0_i32_1 = arith.constant 0 : i32
    return %c0_i32, %c0_i32_0 : i32, i32
  }
  func.func @transform_1(%arg0: i32) -> (i32, i32) {
    %c0_i32 = arith.constant 0 : i32
    %c0_i32_0 = arith.constant 0 : i32
    %c0_i32_1 = arith.constant 0 : i32
    return %c0_i32, %c0_i32_0 : i32, i32
  }
  func.func @transform_2(%arg0: i32) -> (i32, i32) {
    %c0_i32 = arith.constant 0 : i32
    %c0_i32_0 = arith.constant 0 : i32
    %c0_i32_1 = arith.constant 0 : i32
    return %c0_i32, %c0_i32_0 : i32, i32
  }
  func.func @transform_3(%arg0: i32) -> (i32, i32) {
    %c0_i32 = arith.constant 0 : i32
    %c0_i32_0 = arith.constant 0 : i32
    %c0_i32_1 = arith.constant 0 : i32
    return %c0_i32, %c0_i32_0 : i32, i32
  }
  func.func @transform_4(%arg0: i32) -> (i32, i32) {
    %c0_i32 = arith.constant 0 : i32
    %c0_i32_0 = arith.constant 0 : i32
    %c0_i32_1 = arith.constant 0 : i32
    return %c0_i32, %c0_i32_0 : i32, i32
  }
  func.func @transform_5(%arg0: i32) -> (i32, i32) {
    %c0_i32 = arith.constant 0 : i32
    %c0_i32_0 = arith.constant 0 : i32
    %c0_i32_1 = arith.constant 0 : i32
    return %c0_i32, %c0_i32_0 : i32, i32
  }
}

</mosaic_0001>

<llo_original>
// kernel: rel_partial_mha_forward.1
$region0: #{rel_partial_mha_forward.1}
  #allocation0 [shape = 'u32[]', space=smem, size = 0x4, offset = 0x4, fixed_abs, tag = 'smem constant byte address 0x4 - core index']
  #allocation1 [shape = 'u32[144,128]{1,0:T(1,128)}', space=vmem, size = 0x12000, scoped, tag = 'internal scratch']
  %s0 = inlined_call_operand.vmem [shape: f32[8,64], index: 0, kind: input, shape index: {}]
  %s1 = inlined_call_operand.vmem [shape: f32[8,32], index: 1, kind: input, shape index: {}]
  %s2 = inlined_call_operand.vmem [shape: f32[32,128], index: 2, kind: input, shape index: {}]
  %s3 = inlined_call_operand.vmem [shape: f32[32,32], index: 3, kind: input, shape index: {}]
  %s4 = inlined_call_operand.vmem [shape: f32[96,64], index: 4, kind: input, shape index: {}]
  %s5 = inlined_call_operand.vmem [shape: f32[8,64], index: 5, kind: output, shape index: {}]
  %s6 = sld [smem:[#allocation0]]
  $region30: #{rel_partial_mha_forward.1} parent=0
    _
  %s8 = ssub.s32 1, %s6
  %s9 = scalar_select 0, %s8, %s6
  // Predicated region
  $region2: #{rel_partial_mha_forward.1} parent=0 // pred_check
    _
  $region3: #{rel_partial_mha_forward.1} parent=0 // pred_check_branch
    %11 = sbr.rel (0) target = $region5
  $region4: #{rel_partial_mha_forward.1} parent=0 // pred_region
    _
  $region5: #{rel_partial_mha_forward.1} parent=0 // pred_fallthru
    _
  // Predicated region
  $region6: #{rel_partial_mha_forward.1} parent=0 // pred_check
    _
  $region7: #{rel_partial_mha_forward.1} parent=0 // pred_check_branch
    %13 = sbr.rel (0) target = $region9
  $region8: #{rel_partial_mha_forward.1} parent=0 // pred_region
    _
  $region9: #{rel_partial_mha_forward.1} parent=0 // pred_fallthru
    _
  // Predicated region
  $region10: #{rel_partial_mha_forward.1} parent=0 // pred_check
    _
  $region11: #{rel_partial_mha_forward.1} parent=0 // pred_check_branch
    %15 = sbr.rel (0) target = $region13
  $region12: #{rel_partial_mha_forward.1} parent=0 // pred_region
    _
  $region13: #{rel_partial_mha_forward.1} parent=0 // pred_fallthru
    _
  // Predicated region
  $region14: #{rel_partial_mha_forward.1} parent=0 // pred_check
    _
  $region15: #{rel_partial_mha_forward.1} parent=0 // pred_check_branch
    %17 = sbr.rel (0) target = $region17
  $region16: #{rel_partial_mha_forward.1} parent=0 // pred_region
    _
  $region17: #{rel_partial_mha_forward.1} parent=0 // pred_fallthru
    _
  // Predicated region
  $region18: #{rel_partial_mha_forward.1} parent=0 // pred_check
    _
  $region19: #{rel_partial_mha_forward.1} parent=0 // pred_check_branch
    %19 = sbr.rel (0) target = $region21
  $region20: #{rel_partial_mha_forward.1} parent=0 // pred_region
    _
  $region21: #{rel_partial_mha_forward.1} parent=0 // pred_fallthru
    _
  %v20 = vld [vmem:[%s4] sm:$0xff]
  %v21 = vld [vmem:[%s4 + $0x8] sm:$0xff]
  %v22 = vld [vmem:[%s4 + $0x10] sm:$0xff]
  %v23 = vld [vmem:[%s4 + $0x18] sm:$0xff]
  %v24 = vld [vmem:[%s4 + $0x20] sm:$0xff]
  %v25 = vld [vmem:[%s4 + $0x28] sm:$0xff]
  %v26 = vld [vmem:[%s4 + $0x30] sm:$0xff]
  %v27 = vld [vmem:[%s4 + $0x38] sm:$0xff]
  %v28 = vld [vmem:[%s4 + $0x40] sm:$0xff]
  %v29 = vld [vmem:[%s4 + $0x48] sm:$0xff]
  %v30 = vld [vmem:[%s4 + $0x50] sm:$0xff]
  %v31 = vld [vmem:[%s4 + $0x58] sm:$0x1]
  %v32 = vld [vmem:[%s4 + $0x59] sm:$0x1]
  %v33 = vld [vmem:[%s4 + $0x5a] sm:$0x1]
  %v34 = vld [vmem:[%s4 + $0x5b] sm:$0x1]
  %v35 = vlaneseq
  %v36 = vshrl.u32 %v35, 7
  %v37 = vadd.s32 %v36, 8
  %v38 = vadd.s32 %v36, 16
  %v39 = vadd.s32 %v36, 24
  %v40 = vadd.s32 %v36, 32
  %v41 = vadd.s32 %v36, 40
  %v42 = vadd.s32 %v36, 48
  %v43 = vadd.s32 %v36, 56
  %v44 = vand.u32 %v36, 7
  %v45 = vand.u32 %v37, 7
  %v46 = vand.u32 %v38, 7
  %v47 = vand.u32 %v39, 7
  %v48 = vand.u32 %v40, 7
  %v49 = vand.u32 %v41, 7
  %v50 = vand.u32 %v42, 7
  %v51 = vand.u32 %v43, 7
  %v52 = vlaneseq
  %v53 = vand.u32 %v52, 127
  %v54 = vadd.s32 %v44, 1
  %v55 = vadd.s32 %v45, 1
  %v56 = vadd.s32 %v46, 1
  %v57 = vadd.s32 %v47, 1
  %v58 = vadd.s32 %v48, 1
  %v59 = vadd.s32 %v49, 1
  %v60 = vadd.s32 %v50, 1
  %v61 = vadd.s32 %v51, 1
  %v62 = vand.u32 %v54, 1
  %v63 = vand.u32 %v55, 1
  %v64 = vand.u32 %v56, 1
  %v65 = vand.u32 %v57, 1
  %v66 = vand.u32 %v58, 1
  %v67 = vand.u32 %v59, 1
  %v68 = vand.u32 %v60, 1
  %v69 = vand.u32 %v61, 1
  %vm70 = vcmp.ne.s32.totalorder %v62, 0
  %vm71 = vcmp.ne.s32.totalorder %v63, 0
  %vm72 = vcmp.ne.s32.totalorder %v64, 0
  %vm73 = vcmp.ne.s32.totalorder %v65, 0
  %vm74 = vcmp.ne.s32.totalorder %v66, 0
  %vm75 = vcmp.ne.s32.totalorder %v67, 0
  %vm76 = vcmp.ne.s32.totalorder %v68, 0
  %vm77 = vcmp.ne.s32.totalorder %v69, 0
  %v78 = vand.u32 %v54, 2
  %v79 = vand.u32 %v55, 2
  %v80 = vand.u32 %v56, 2
  %v81 = vand.u32 %v57, 2
  %v82 = vand.u32 %v58, 2
  %v83 = vand.u32 %v59, 2
  %v84 = vand.u32 %v60, 2
  %v85 = vand.u32 %v61, 2
  %vm86 = vcmp.ne.s32.totalorder %v78, 0
  %vm87 = vcmp.ne.s32.totalorder %v79, 0
  %vm88 = vcmp.ne.s32.totalorder %v80, 0
  %vm89 = vcmp.ne.s32.totalorder %v81, 0
  %vm90 = vcmp.ne.s32.totalorder %v82, 0
  %vm91 = vcmp.ne.s32.totalorder %v83, 0
  %vm92 = vcmp.ne.s32.totalorder %v84, 0
  %vm93 = vcmp.ne.s32.totalorder %v85, 0
  %v94 = vand.u32 %v54, 4
  %v95 = vand.u32 %v55, 4
  %v96 = vand.u32 %v56, 4
  %v97 = vand.u32 %v57, 4
  %v98 = vand.u32 %v58, 4
  %v99 = vand.u32 %v59, 4
  %v100 = vand.u32 %v60, 4
  %v101 = vand.u32 %v61, 4
  %vm102 = vcmp.ne.s32.totalorder %v94, 0
  %vm103 = vcmp.ne.s32.totalorder %v95, 0
  %vm104 = vcmp.ne.s32.totalorder %v96, 0
  %vm105 = vcmp.ne.s32.totalorder %v97, 0
  %vm106 = vcmp.ne.s32.totalorder %v98, 0
  %vm107 = vcmp.ne.s32.totalorder %v99, 0
  %vm108 = vcmp.ne.s32.totalorder %v100, 0
  %vm109 = vcmp.ne.s32.totalorder %v101, 0
  %vm110 = vcmp.le.s32.totalorder %v53, %v44
  %vm111 = vcmp.le.s32.totalorder %v53, %v45
  %vm112 = vcmp.le.s32.totalorder %v53, %v46
  %vm113 = vcmp.le.s32.totalorder %v53, %v47
  %vm114 = vcmp.le.s32.totalorder %v53, %v48
  %vm115 = vcmp.le.s32.totalorder %v53, %v49
  %vm116 = vcmp.le.s32.totalorder %v53, %v50
  %vm117 = vcmp.le.s32.totalorder %v53, %v51
  %vm118 = vcmp.eq.s32.totalorder %v53, %v54
  %vm119 = vcmp.eq.s32.totalorder %v53, %v55
  %vm120 = vcmp.eq.s32.totalorder %v53, %v56
  %vm121 = vcmp.eq.s32.totalorder %v53, %v57
  %vm122 = vcmp.eq.s32.totalorder %v53, %v58
  %vm123 = vcmp.eq.s32.totalorder %v53, %v59
  %vm124 = vcmp.eq.s32.totalorder %v53, %v60
  %vm125 = vcmp.eq.s32.totalorder %v53, %v61
  %v126 = vld [vmem:[%s0] sm:$0xff]
  %v127 = vld [vmem:[%s1] sm:$0xff]
  %129 = vrot.lane.b32.xlu0 %v126, 96
  %v130 = vpop.permute.xlu0 %129
  %v132 = vld [vmem:[%s2] sm:$0xff]
  %v133 = vld [vmem:[%s2 + $0x8] sm:$0xff]
  %v134 = vld [vmem:[%s2 + $0x10] sm:$0xff]
  %v135 = vld [vmem:[%s2 + $0x18] sm:$0xff]
  %vm136 = vcmask 261120
  %v137 = vsel %vm136, %v126, 0
  %v139 = vsel %vm136, %v130, 0
  %v142 = vsel %vm136, %v127, 0
  %144 = vmatprep.subr.mxu0 0.0
  %145 = vmatpush1.msra.mxu0 0.0
  %146 = vmatprep.subr.mxu0 0.0
  %147 = vmatpush1.msra.mxu0 0.0
  %148 = vmatprep.subr.mxu0 0.0
  %149 = vmatpush1.msra.mxu0 0.0
  %150 = vmatprep.subr.mxu0 0.0
  %151 = vmatpush1.msra.mxu0 0.0
  %152 = vmatprep.subr.mxu0 0.0
  %153 = vmatpush1.msra.mxu0 0.0
  %154 = vmatprep.subr.mxu0 0.0
  %155 = vmatpush1.msra.mxu0 0.0
  %156 = vmatprep.subr.mxu0 0.0
  %157 = vmatpush1.msra.mxu0 0.0
  %158 = vmatprep.subr.mxu0 0.0
  %159 = vmatpush1.msra.mxu0 0.0
  %160 = vmatprep.subr.mxu0 0.0
  %161 = vmatpush1.msra.mxu0 0.0
  %162 = vmatprep.subr.mxu0 0.0
  %163 = vmatpush1.msra.mxu0 0.0
  %164 = vmatprep.subr.mxu0 0.0
  %165 = vmatpush1.msra.mxu0 0.0
  %166 = vmatprep.subr.mxu0 0.0
  %167 = vmatpush1.msra.mxu0 0.0
  %168 = vmatprep.subr.mxu0 0.0
  %169 = vmatpush1.msra.mxu0 %v135
  %170 = vmatprep.subr.mxu0 0.0
  %171 = vmatpush1.msra.mxu0 %v134
  %172 = vmatprep.subr.mxu0 0.0
  %173 = vmatpush1.msra.mxu0 %v133
  %174 = vmatprep.subr.mxu0 0.0
  %175 = vmatpush1.msra.mxu0 %v132
  %176 = vmatprep.subr.mxu0 0.0
  %177 = vmatpush2.msra.mxu0 0.0
  %178 = vmatprep.subr.mxu0 0.0
  %179 = vmatpush2.msra.mxu0 0.0
  %180 = vmatprep.subr.mxu0 0.0
  %181 = vmatpush2.msra.mxu0 0.0
  %182 = vmatprep.subr.mxu0 0.0
  %183 = vmatpush2.msra.mxu0 0.0
  %184 = vmatprep.subr.mxu0 0.0
  %185 = vmatpush2.msra.mxu0 0.0
  %186 = vmatprep.subr.mxu0 0.0
  %187 = vmatpush2.msra.mxu0 0.0
  %188 = vmatprep.subr.mxu0 0.0
  %189 = vmatpush2.msra.mxu0 0.0
  %190 = vmatprep.subr.mxu0 0.0
  %191 = vmatpush2.msra.mxu0 0.0
  %192 = vmatprep.subr.mxu0 0.0
  %193 = vmatpush2.msra.mxu0 0.0
  %194 = vmatprep.subr.mxu0 0.0
  %195 = vmatpush2.msra.mxu0 0.0
  %196 = vmatprep.subr.mxu0 0.0
  %197 = vmatpush2.msra.mxu0 0.0
  %198 = vmatprep.subr.mxu0 0.0
  %199 = vmatpush2.msra.mxu0 0.0
  %200 = vmatprep.subr.mxu0 0.0
  %201 = vmatpush2.msra.mxu0 0.0
  %202 = vmatprep.subr.mxu0 0.0
  %203 = vmatpush2.msra.mxu0 0.0
  %204 = vmatprep.subr.mxu0 0.0
  %205 = vmatpush2.msra.mxu0 0.0
  %206 = vmatprep.subr.mxu0 0.0
  %207 = vmatpush2.msra.mxu0 0.0
  %208 = vmatprep.mubr.f32.mxu0 0.0
  %209 = vmatmul.mubr.f32.gmra.mxu0 %v137
  %v210 = vpop.f32.mrf.mxu0
  %v211 = vadd.f32 0.0, %v210
  %v212 = vpop.f32.mrf.mxu0
  %213 = vmatprep.mubr.f32.mxu0 0.0
  %214 = vmatmul.mubr.f32.gmra.mxu0 %v139
  %v215 = vpop.f32.mrf.mxu0
  %v216 = vadd.f32 0.0, %v215
  %v217 = vpop.f32.mrf.mxu0
  %218 = vmatprep.mubr.f32.mxu0 0.0
  %219 = vmatmul.mubr.f32.gmra.mxu0 %v142
  %v220 = vpop.f32.mrf.mxu0
  %v221 = vadd.f32 0.0, %v220
  %v222 = vpop.f32.mrf.mxu0
  %223 = vdwg.mxu0
  %v224 = vlaneseq
  %v225 = vshrl.u32 %v224, 7
  %v226 = vsub.s32 0, %v225
  %v227 = vrot.slane %v31, %v226
  %v228 = vadd.f32 %v211, %v227
  %v229 = vadd.f32 %v216, %v227
  %v230 = vlaneseq
  %v231 = vshrl.u32 %v230, 7
  %v232 = vsub.s32 0, %v231
  %v233 = vrot.slane %v32, %v232
  %v234 = vadd.f32 %v211, %v233
  %v235 = vadd.f32 %v216, %v233
  %237 = vrot.lane.b32.xlu0 %v221, 32
  %v238 = vpop.permute.xlu0 %237
  %vm239 = vcmask 64512
  %v241 = vsel %vm239, %v234, 0
  %v244 = vsel %vm239, %v235, 0
  %v246 = vsel %vm239, %v238, 0
  %248 = vmatprep.subr.mxu0 0.0
  %249 = vmatpush1.xpose.msra.mxu0 0.0
  %250 = vmatprep.subr.mxu0 0.0
  %251 = vmatpush1.xpose.msra.mxu0 0.0
  %252 = vmatprep.subr.mxu0 0.0
  %253 = vmatpush1.xpose.msra.mxu0 0.0
  %254 = vmatprep.subr.mxu0 0.0
  %255 = vmatpush1.xpose.msra.mxu0 0.0
  %256 = vmatprep.subr.mxu0 0.0
  %257 = vmatpush1.xpose.msra.mxu0 0.0
  %258 = vmatprep.subr.mxu0 0.0
  %259 = vmatpush1.xpose.msra.mxu0 0.0
  %260 = vmatprep.subr.mxu0 0.0
  %261 = vmatpush1.xpose.msra.mxu0 0.0
  %262 = vmatprep.subr.mxu0 0.0
  %263 = vmatpush1.xpose.msra.mxu0 0.0
  %264 = vmatprep.subr.mxu0 0.0
  %265 = vmatpush1.xpose.msra.mxu0 0.0
  %266 = vmatprep.subr.mxu0 0.0
  %267 = vmatpush1.xpose.msra.mxu0 0.0
  %268 = vmatprep.subr.mxu0 0.0
  %269 = vmatpush1.xpose.msra.mxu0 0.0
  %270 = vmatprep.subr.mxu0 0.0
  %271 = vmatpush1.xpose.msra.mxu0 0.0
  %272 = vmatprep.subr.mxu0 0.0
  %273 = vmatpush1.xpose.msra.mxu0 0.0
  %274 = vmatprep.subr.mxu0 0.0
  %275 = vmatpush1.xpose.msra.mxu0 0.0
  %276 = vmatprep.subr.mxu0 0.0
  %277 = vmatpush1.xpose.msra.mxu0 0.0
  %278 = vmatprep.subr.mxu0 0.0
  %279 = vmatpush1.xpose.msra.mxu0 %v246
  %280 = vmatprep.subr.mxu0 0.0
  %281 = vmatpush2.xpose.msra.mxu0 0.0
  %282 = vmatprep.subr.mxu0 0.0
  %283 = vmatpush2.xpose.msra.mxu0 0.0
  %284 = vmatprep.subr.mxu0 0.0
  %285 = vmatpush2.xpose.msra.mxu0 0.0
  %286 = vmatprep.subr.mxu0 0.0
  %287 = vmatpush2.xpose.msra.mxu0 0.0
  %288 = vmatprep.subr.mxu0 0.0
  %289 = vmatpush2.xpose.msra.mxu0 0.0
  %290 = vmatprep.subr.mxu0 0.0
  %291 = vmatpush2.xpose.msra.mxu0 0.0
  %292 = vmatprep.subr.mxu0 0.0
  %293 = vmatpush2.xpose.msra.mxu0 0.0
  %294 = vmatprep.subr.mxu0 0.0
  %295 = vmatpush2.xpose.msra.mxu0 0.0
  %296 = vmatprep.subr.mxu0 0.0
  %297 = vmatpush2.xpose.msra.mxu0 0.0
  %298 = vmatprep.subr.mxu0 0.0
  %299 = vmatpush2.xpose.msra.mxu0 0.0
  %300 = vmatprep.subr.mxu0 0.0
  %301 = vmatpush2.xpose.msra.mxu0 0.0
  %302 = vmatprep.subr.mxu0 0.0
  %303 = vmatpush2.xpose.msra.mxu0 0.0
  %304 = vmatprep.subr.mxu0 0.0
  %305 = vmatpush2.xpose.msra.mxu0 0.0
  %306 = vmatprep.subr.mxu0 0.0
  %307 = vmatpush2.xpose.msra.mxu0 0.0
  %308 = vmatprep.subr.mxu0 0.0
  %309 = vmatpush2.xpose.msra.mxu0 0.0
  %310 = vmatprep.subr.mxu0 0.0
  %311 = vmatpush2.xpose.msra.mxu0 0.0
  %312 = vmatprep.mubr.f32.mxu0 0.0
  %313 = vmatmul.mubr.f32.gmra.mxu0 %v241
  %v314 = vpop.f32.mrf.mxu0
  %v315 = vadd.f32 0.0, %v314
  %v316 = vpop.f32.mrf.mxu0
  %317 = vmatprep.mubr.f32.mxu0 0.0
  %318 = vmatmul.mubr.f32.gmra.mxu0 %v244
  %v319 = vpop.f32.mrf.mxu0
  %v320 = vadd.f32 0.0, %v319
  %v321 = vpop.f32.mrf.mxu0
  %322 = vdwg.mxu0
  %323 = vrot.lane.b32.xlu0 %v234, 120
  %v324 = vpop.permute.xlu0 %323
  %325 = vrot.lane.b32.xlu0 %v235, 120
  %v326 = vpop.permute.xlu0 %325
  %327 = vrot.lane.b32.xlu0 %v221, 24
  %v328 = vpop.permute.xlu0 %327
  %v329 = vsel %vm239, %v324, 0
  %v331 = vsel %vm239, %v326, 0
  %v333 = vsel %vm239, %v328, 0
  %335 = vmatprep.subr.mxu0 0.0
  %336 = vmatpush1.xpose.msra.mxu0 0.0
  %337 = vmatprep.subr.mxu0 0.0
  %338 = vmatpush1.xpose.msra.mxu0 0.0
  %339 = vmatprep.subr.mxu0 0.0
  %340 = vmatpush1.xpose.msra.mxu0 0.0
  %341 = vmatprep.subr.mxu0 0.0
  %342 = vmatpush1.xpose.msra.mxu0 0.0
  %343 = vmatprep.subr.mxu0 0.0
  %344 = vmatpush1.xpose.msra.mxu0 0.0
  %345 = vmatprep.subr.mxu0 0.0
  %346 = vmatpush1.xpose.msra.mxu0 0.0
  %347 = vmatprep.subr.mxu0 0.0
  %348 = vmatpush1.xpose.msra.mxu0 0.0
  %349 = vmatprep.subr.mxu0 0.0
  %350 = vmatpush1.xpose.msra.mxu0 0.0
  %351 = vmatprep.subr.mxu0 0.0
  %352 = vmatpush1.xpose.msra.mxu0 0.0
  %353 = vmatprep.subr.mxu0 0.0
  %354 = vmatpush1.xpose.msra.mxu0 0.0
  %355 = vmatprep.subr.mxu0 0.0
  %356 = vmatpush1.xpose.msra.mxu0 0.0
  %357 = vmatprep.subr.mxu0 0.0
  %358 = vmatpush1.xpose.msra.mxu0 0.0
  %359 = vmatprep.subr.mxu0 0.0
  %360 = vmatpush1.xpose.msra.mxu0 0.0
  %361 = vmatprep.subr.mxu0 0.0
  %362 = vmatpush1.xpose.msra.mxu0 0.0
  %363 = vmatprep.subr.mxu0 0.0
  %364 = vmatpush1.xpose.msra.mxu0 0.0
  %365 = vmatprep.subr.mxu0 0.0
  %366 = vmatpush1.xpose.msra.mxu0 %v333
  %367 = vmatprep.subr.mxu0 0.0
  %368 = vmatpush2.xpose.msra.mxu0 0.0
  %369 = vmatprep.subr.mxu0 0.0
  %370 = vmatpush2.xpose.msra.mxu0 0.0
  %371 = vmatprep.subr.mxu0 0.0
  %372 = vmatpush2.xpose.msra.mxu0 0.0
  %373 = vmatprep.subr.mxu0 0.0
  %374 = vmatpush2.xpose.msra.mxu0 0.0
  %375 = vmatprep.subr.mxu0 0.0
  %376 = vmatpush2.xpose.msra.mxu0 0.0
  %377 = vmatprep.subr.mxu0 0.0
  %378 = vmatpush2.xpose.msra.mxu0 0.0
  %379 = vmatprep.subr.mxu0 0.0
  %380 = vmatpush2.xpose.msra.mxu0 0.0
  %381 = vmatprep.subr.mxu0 0.0
  %382 = vmatpush2.xpose.msra.mxu0 0.0
  %383 = vmatprep.subr.mxu0 0.0
  %384 = vmatpush2.xpose.msra.mxu0 0.0
  %385 = vmatprep.subr.mxu0 0.0
  %386 = vmatpush2.xpose.msra.mxu0 0.0
  %387 = vmatprep.subr.mxu0 0.0
  %388 = vmatpush2.xpose.msra.mxu0 0.0
  %389 = vmatprep.subr.mxu0 0.0
  %390 = vmatpush2.xpose.msra.mxu0 0.0
  %391 = vmatprep.subr.mxu0 0.0
  %392 = vmatpush2.xpose.msra.mxu0 0.0
  %393 = vmatprep.subr.mxu0 0.0
  %394 = vmatpush2.xpose.msra.mxu0 0.0
  %395 = vmatprep.subr.mxu0 0.0
  %396 = vmatpush2.xpose.msra.mxu0 0.0
  %397 = vmatprep.subr.mxu0 0.0
  %398 = vmatpush2.xpose.msra.mxu0 0.0
  %399 = vmatprep.mubr.f32.mxu0 0.0
  %400 = vmatmul.mubr.f32.gmra.mxu0 %v329
  %v401 = vpop.f32.mrf.mxu0
  %v402 = vadd.f32 0.0, %v401
  %v403 = vpop.f32.mrf.mxu0
  %404 = vmatprep.mubr.f32.mxu0 0.0
  %405 = vmatmul.mubr.f32.gmra.mxu0 %v331
  %v406 = vpop.f32.mrf.mxu0
  %v407 = vadd.f32 0.0, %v406
  %v408 = vpop.f32.mrf.mxu0
  %409 = vdwg.mxu0
  %410 = vrot.lane.b32.xlu0 %v234, 112
  %v411 = vpop.permute.xlu0 %410
  %412 = vrot.lane.b32.xlu0 %v235, 112
  %v413 = vpop.permute.xlu0 %412
  %414 = vrot.lane.b32.xlu0 %v221, 16
  %v415 = vpop.permute.xlu0 %414
  %v416 = vsel %vm239, %v411, 0
  %v418 = vsel %vm239, %v413, 0
  %v420 = vsel %vm239, %v415, 0
  %422 = vmatprep.subr.mxu0 0.0
  %423 = vmatpush1.xpose.msra.mxu0 0.0
  %424 = vmatprep.subr.mxu0 0.0
  %425 = vmatpush1.xpose.msra.mxu0 0.0
  %426 = vmatprep.subr.mxu0 0.0
  %427 = vmatpush1.xpose.msra.mxu0 0.0
  %428 = vmatprep.subr.mxu0 0.0
  %429 = vmatpush1.xpose.msra.mxu0 0.0
  %430 = vmatprep.subr.mxu0 0.0
  %431 = vmatpush1.xpose.msra.mxu0 0.0
  %432 = vmatprep.subr.mxu0 0.0
  %433 = vmatpush1.xpose.msra.mxu0 0.0
  %434 = vmatprep.subr.mxu0 0.0
  %435 = vmatpush1.xpose.msra.mxu0 0.0
  %436 = vmatprep.subr.mxu0 0.0
  %437 = vmatpush1.xpose.msra.mxu0 0.0
  %438 = vmatprep.subr.mxu0 0.0
  %439 = vmatpush1.xpose.msra.mxu0 0.0
  %440 = vmatprep.subr.mxu0 0.0
  %441 = vmatpush1.xpose.msra.mxu0 0.0
  %442 = vmatprep.subr.mxu0 0.0
  %443 = vmatpush1.xpose.msra.mxu0 0.0
  %444 = vmatprep.subr.mxu0 0.0
  %445 = vmatpush1.xpose.msra.mxu0 0.0
  %446 = vmatprep.subr.mxu0 0.0
  %447 = vmatpush1.xpose.msra.mxu0 0.0
  %448 = vmatprep.subr.mxu0 0.0
  %449 = vmatpush1.xpose.msra.mxu0 0.0
  %450 = vmatprep.subr.mxu0 0.0
  %451 = vmatpush1.xpose.msra.mxu0 0.0
  %452 = vmatprep.subr.mxu0 0.0
  %453 = vmatpush1.xpose.msra.mxu0 %v420
  %454 = vmatprep.subr.mxu0 0.0
  %455 = vmatpush2.xpose.msra.mxu0 0.0
  %456 = vmatprep.subr.mxu0 0.0
  %457 = vmatpush2.xpose.msra.mxu0 0.0
  %458 = vmatprep.subr.mxu0 0.0
  %459 = vmatpush2.xpose.msra.mxu0 0.0
  %460 = vmatprep.subr.mxu0 0.0
  %461 = vmatpush2.xpose.msra.mxu0 0.0
  %462 = vmatprep.subr.mxu0 0.0
  %463 = vmatpush2.xpose.msra.mxu0 0.0
  %464 = vmatprep.subr.mxu0 0.0
  %465 = vmatpush2.xpose.msra.mxu0 0.0
  %466 = vmatprep.subr.mxu0 0.0
  %467 = vmatpush2.xpose.msra.mxu0 0.0
  %468 = vmatprep.subr.mxu0 0.0
  %469 = vmatpush2.xpose.msra.mxu0 0.0
  %470 = vmatprep.subr.mxu0 0.0
  %471 = vmatpush2.xpose.msra.mxu0 0.0
  %472 = vmatprep.subr.mxu0 0.0
  %473 = vmatpush2.xpose.msra.mxu0 0.0
  %474 = vmatprep.subr.mxu0 0.0
  %475 = vmatpush2.xpose.msra.mxu0 0.0
  %476 = vmatprep.subr.mxu0 0.0
  %477 = vmatpush2.xpose.msra.mxu0 0.0
  %478 = vmatprep.subr.mxu0 0.0
  %479 = vmatpush2.xpose.msra.mxu0 0.0
  %480 = vmatprep.subr.mxu0 0.0
  %481 = vmatpush2.xpose.msra.mxu0 0.0
  %482 = vmatprep.subr.mxu0 0.0
  %483 = vmatpush2.xpose.msra.mxu0 0.0
  %484 = vmatprep.subr.mxu0 0.0
  %485 = vmatpush2.xpose.msra.mxu0 0.0
  %486 = vmatprep.mubr.f32.mxu0 0.0
  %487 = vmatmul.mubr.f32.gmra.mxu0 %v416
  %v488 = vpop.f32.mrf.mxu0
  %v489 = vadd.f32 0.0, %v488
  %v490 = vpop.f32.mrf.mxu0
  %491 = vmatprep.mubr.f32.mxu0 0.0
  %492 = vmatmul.mubr.f32.gmra.mxu0 %v418
  %v493 = vpop.f32.mrf.mxu0
  %v494 = vadd.f32 0.0, %v493
  %v495 = vpop.f32.mrf.mxu0
  %496 = vdwg.mxu0
  %497 = vrot.lane.b32.xlu0 %v234, 104
  %v498 = vpop.permute.xlu0 %497
  %499 = vrot.lane.b32.xlu0 %v235, 104
  %v500 = vpop.permute.xlu0 %499
  %501 = vrot.lane.b32.xlu0 %v221, 8
  %v502 = vpop.permute.xlu0 %501
  %v503 = vsel %vm239, %v498, 0
  %v505 = vsel %vm239, %v500, 0
  %v507 = vsel %vm239, %v502, 0
  %509 = vmatprep.subr.mxu0 0.0
  %510 = vmatpush1.xpose.msra.mxu0 0.0
  %511 = vmatprep.subr.mxu0 0.0
  %512 = vmatpush1.xpose.msra.mxu0 0.0
  %513 = vmatprep.subr.mxu0 0.0
  %514 = vmatpush1.xpose.msra.mxu0 0.0
  %515 = vmatprep.subr.mxu0 0.0
  %516 = vmatpush1.xpose.msra.mxu0 0.0
  %517 = vmatprep.subr.mxu0 0.0
  %518 = vmatpush1.xpose.msra.mxu0 0.0
  %519 = vmatprep.subr.mxu0 0.0
  %520 = vmatpush1.xpose.msra.mxu0 0.0
  %521 = vmatprep.subr.mxu0 0.0
  %522 = vmatpush1.xpose.msra.mxu0 0.0
  %523 = vmatprep.subr.mxu0 0.0
  %524 = vmatpush1.xpose.msra.mxu0 0.0
  %525 = vmatprep.subr.mxu0 0.0
  %526 = vmatpush1.xpose.msra.mxu0 0.0
  %527 = vmatprep.subr.mxu0 0.0
  %528 = vmatpush1.xpose.msra.mxu0 0.0
  %529 = vmatprep.subr.mxu0 0.0
  %530 = vmatpush1.xpose.msra.mxu0 0.0
  %531 = vmatprep.subr.mxu0 0.0
  %532 = vmatpush1.xpose.msra.mxu0 0.0
  %533 = vmatprep.subr.mxu0 0.0
  %534 = vmatpush1.xpose.msra.mxu0 0.0
  %535 = vmatprep.subr.mxu0 0.0
  %536 = vmatpush1.xpose.msra.mxu0 0.0
  %537 = vmatprep.subr.mxu0 0.0
  %538 = vmatpush1.xpose.msra.mxu0 0.0
  %539 = vmatprep.subr.mxu0 0.0
  %540 = vmatpush1.xpose.msra.mxu0 %v507
  %541 = vmatprep.subr.mxu0 0.0
  %542 = vmatpush2.xpose.msra.mxu0 0.0
  %543 = vmatprep.subr.mxu0 0.0
  %544 = vmatpush2.xpose.msra.mxu0 0.0
  %545 = vmatprep.subr.mxu0 0.0
  %546 = vmatpush2.xpose.msra.mxu0 0.0
  %547 = vmatprep.subr.mxu0 0.0
  %548 = vmatpush2.xpose.msra.mxu0 0.0
  %549 = vmatprep.subr.mxu0 0.0
  %550 = vmatpush2.xpose.msra.mxu0 0.0
  %551 = vmatprep.subr.mxu0 0.0
  %552 = vmatpush2.xpose.msra.mxu0 0.0
  %553 = vmatprep.subr.mxu0 0.0
  %554 = vmatpush2.xpose.msra.mxu0 0.0
  %555 = vmatprep.subr.mxu0 0.0
  %556 = vmatpush2.xpose.msra.mxu0 0.0
  %557 = vmatprep.subr.mxu0 0.0
  %558 = vmatpush2.xpose.msra.mxu0 0.0
  %559 = vmatprep.subr.mxu0 0.0
  %560 = vmatpush2.xpose.msra.mxu0 0.0
  %561 = vmatprep.subr.mxu0 0.0
  %562 = vmatpush2.xpose.msra.mxu0 0.0
  %563 = vmatprep.subr.mxu0 0.0
  %564 = vmatpush2.xpose.msra.mxu0 0.0
  %565 = vmatprep.subr.mxu0 0.0
  %566 = vmatpush2.xpose.msra.mxu0 0.0
  %567 = vmatprep.subr.mxu0 0.0
  %568 = vmatpush2.xpose.msra.mxu0 0.0
  %569 = vmatprep.subr.mxu0 0.0
  %570 = vmatpush2.xpose.msra.mxu0 0.0
  %571 = vmatprep.subr.mxu0 0.0
  %572 = vmatpush2.xpose.msra.mxu0 0.0
  %573 = vmatprep.mubr.f32.mxu0 0.0
  %574 = vmatmul.mubr.f32.gmra.mxu0 %v503
  %v575 = vpop.f32.mrf.mxu0
  %v576 = vadd.f32 0.0, %v575
  %v577 = vpop.f32.mrf.mxu0
  %578 = vmatprep.mubr.f32.mxu0 0.0
  %579 = vmatmul.mubr.f32.gmra.mxu0 %v505
  %v580 = vpop.f32.mrf.mxu0
  %v581 = vadd.f32 0.0, %v580
  %v582 = vpop.f32.mrf.mxu0
  %583 = vdwg.mxu0
  %v585 = vsel %vm239, %v315, 0
  %v588 = vsel %vm239, %v320, 0
  %v591 = vsel %vm239, %v402, 0
  %v594 = vsel %vm239, %v407, 0
  %v597 = vsel %vm239, %v489, 0
  %v600 = vsel %vm239, %v494, 0
  %v603 = vsel %vm239, %v576, 0
  %v606 = vsel %vm239, %v581, 0
  %608 = vmatprep.subr.mxu0 0.0
  %609 = vmatpush1.msra.mxu0 0.0
  %610 = vmatprep.subr.mxu0 0.0
  %611 = vmatpush1.msra.mxu0 0.0
  %612 = vmatprep.subr.mxu0 0.0
  %613 = vmatpush1.msra.mxu0 0.0
  %614 = vmatprep.subr.mxu0 0.0
  %615 = vmatpush1.msra.mxu0 0.0
  %616 = vmatprep.subr.mxu0 0.0
  %617 = vmatpush1.msra.mxu0 0.0
  %618 = vmatprep.subr.mxu0 0.0
  %619 = vmatpush1.msra.mxu0 0.0
  %620 = vmatprep.subr.mxu0 0.0
  %621 = vmatpush1.msra.mxu0 0.0
  %622 = vmatprep.subr.mxu0 0.0
  %623 = vmatpush1.msra.mxu0 0.0
  %624 = vmatprep.subr.mxu0 0.0
  %625 = vmatpush1.msra.mxu0 0.0
  %626 = vmatprep.subr.mxu0 0.0
  %627 = vmatpush1.msra.mxu0 0.0
  %628 = vmatprep.subr.mxu0 0.0
  %629 = vmatpush1.msra.mxu0 0.0
  %630 = vmatprep.subr.mxu0 0.0
  %631 = vmatpush1.msra.mxu0 0.0
  %632 = vmatprep.subr.mxu0 0.0
  %633 = vmatpush1.msra.mxu0 0.0
  %634 = vmatprep.subr.mxu0 0.0
  %635 = vmatpush1.msra.mxu0 0.0
  %636 = vmatprep.subr.mxu0 0.0
  %637 = vmatpush1.msra.mxu0 0.0
  %638 = vmatprep.subr.mxu0 0.0
  %639 = vmatpush1.msra.mxu0 %v28
  %640 = vmatprep.subr.mxu0 0.0
  %641 = vmatpush2.msra.mxu0 0.0
  %642 = vmatprep.subr.mxu0 0.0
  %643 = vmatpush2.msra.mxu0 0.0
  %644 = vmatprep.subr.mxu0 0.0
  %645 = vmatpush2.msra.mxu0 0.0
  %646 = vmatprep.subr.mxu0 0.0
  %647 = vmatpush2.msra.mxu0 0.0
  %648 = vmatprep.subr.mxu0 0.0
  %649 = vmatpush2.msra.mxu0 0.0
  %650 = vmatprep.subr.mxu0 0.0
  %651 = vmatpush2.msra.mxu0 0.0
  %652 = vmatprep.subr.mxu0 0.0
  %653 = vmatpush2.msra.mxu0 0.0
  %654 = vmatprep.subr.mxu0 0.0
  %655 = vmatpush2.msra.mxu0 0.0
  %656 = vmatprep.subr.mxu0 0.0
  %657 = vmatpush2.msra.mxu0 0.0
  %658 = vmatprep.subr.mxu0 0.0
  %659 = vmatpush2.msra.mxu0 0.0
  %660 = vmatprep.subr.mxu0 0.0
  %661 = vmatpush2.msra.mxu0 0.0
  %662 = vmatprep.subr.mxu0 0.0
  %663 = vmatpush2.msra.mxu0 0.0
  %664 = vmatprep.subr.mxu0 0.0
  %665 = vmatpush2.msra.mxu0 0.0
  %666 = vmatprep.subr.mxu0 0.0
  %667 = vmatpush2.msra.mxu0 0.0
  %668 = vmatprep.subr.mxu0 0.0
  %669 = vmatpush2.msra.mxu0 0.0
  %670 = vmatprep.subr.mxu0 0.0
  %671 = vmatpush2.msra.mxu0 0.0
  %672 = vmatprep.mubr.f32.mxu0 0.0
  %673 = vmatmul.mubr.f32.gmra.mxu0 %v585
  %v674 = vpop.f32.mrf.mxu0
  %v675 = vadd.f32 0.0, %v674
  %v676 = vpop.f32.mrf.mxu0
  %677 = vmatprep.mubr.f32.mxu0 0.0
  %678 = vmatmul.mubr.f32.gmra.mxu0 %v588
  %v679 = vpop.f32.mrf.mxu0
  %v680 = vadd.f32 0.0, %v679
  %v681 = vpop.f32.mrf.mxu0
  %682 = vmatprep.mubr.f32.mxu0 0.0
  %683 = vmatmul.mubr.f32.gmra.mxu0 %v591
  %v684 = vpop.f32.mrf.mxu0
  %v685 = vadd.f32 0.0, %v684
  %v686 = vpop.f32.mrf.mxu0
  %687 = vmatprep.mubr.f32.mxu0 0.0
  %688 = vmatmul.mubr.f32.gmra.mxu0 %v594
  %v689 = vpop.f32.mrf.mxu0
  %v690 = vadd.f32 0.0, %v689
  %v691 = vpop.f32.mrf.mxu0
  %692 = vmatprep.mubr.f32.mxu0 0.0
  %693 = vmatmul.mubr.f32.gmra.mxu0 %v597
  %v694 = vpop.f32.mrf.mxu0
  %v695 = vadd.f32 0.0, %v694
  %v696 = vpop.f32.mrf.mxu0
  %697 = vmatprep.mubr.f32.mxu0 0.0
  %698 = vmatmul.mubr.f32.gmra.mxu0 %v600
  %v699 = vpop.f32.mrf.mxu0
  %v700 = vadd.f32 0.0, %v699
  %v701 = vpop.f32.mrf.mxu0
  %702 = vmatprep.mubr.f32.mxu0 0.0
  %703 = vmatmul.mubr.f32.gmra.mxu0 %v603
  %v704 = vpop.f32.mrf.mxu0
  %v705 = vadd.f32 0.0, %v704
  %v706 = vpop.f32.mrf.mxu0
  %707 = vmatprep.mubr.f32.mxu0 0.0
  %708 = vmatmul.mubr.f32.gmra.mxu0 %v606
  %v709 = vpop.f32.mrf.mxu0
  %v710 = vadd.f32 0.0, %v709
  %v711 = vpop.f32.mrf.mxu0
  %712 = vdwg.mxu0
  %v713 = vsel %vm70, %v675, %v315
  %v714 = vsel %vm71, %v680, %v320
  %v715 = vsel %vm72, %v685, %v402
  %v716 = vsel %vm73, %v690, %v407
  %v717 = vsel %vm74, %v695, %v489
  %v718 = vsel %vm75, %v700, %v494
  %v719 = vsel %vm76, %v705, %v576
  %v720 = vsel %vm77, %v710, %v581
  %v722 = vsel %vm239, %v713, 0
  %v725 = vsel %vm239, %v714, 0
  %v728 = vsel %vm239, %v715, 0
  %v731 = vsel %vm239, %v716, 0
  %v734 = vsel %vm239, %v717, 0
  %v737 = vsel %vm239, %v718, 0
  %v740 = vsel %vm239, %v719, 0
  %v743 = vsel %vm239, %v720, 0
  %745 = vmatprep.subr.mxu0 0.0
  %746 = vmatpush1.msra.mxu0 0.0
  %747 = vmatprep.subr.mxu0 0.0
  %748 = vmatpush1.msra.mxu0 0.0
  %749 = vmatprep.subr.mxu0 0.0
  %750 = vmatpush1.msra.mxu0 0.0
  %751 = vmatprep.subr.mxu0 0.0
  %752 = vmatpush1.msra.mxu0 0.0
  %753 = vmatprep.subr.mxu0 0.0
  %754 = vmatpush1.msra.mxu0 0.0
  %755 = vmatprep.subr.mxu0 0.0
  %756 = vmatpush1.msra.mxu0 0.0
  %757 = vmatprep.subr.mxu0 0.0
  %758 = vmatpush1.msra.mxu0 0.0
  %759 = vmatprep.subr.mxu0 0.0
  %760 = vmatpush1.msra.mxu0 0.0
  %761 = vmatprep.subr.mxu0 0.0
  %762 = vmatpush1.msra.mxu0 0.0
  %763 = vmatprep.subr.mxu0 0.0
  %764 = vmatpush1.msra.mxu0 0.0
  %765 = vmatprep.subr.mxu0 0.0
  %766 = vmatpush1.msra.mxu0 0.0
  %767 = vmatprep.subr.mxu0 0.0
  %768 = vmatpush1.msra.mxu0 0.0
  %769 = vmatprep.subr.mxu0 0.0
  %770 = vmatpush1.msra.mxu0 0.0
  %771 = vmatprep.subr.mxu0 0.0
  %772 = vmatpush1.msra.mxu0 0.0
  %773 = vmatprep.subr.mxu0 0.0
  %774 = vmatpush1.msra.mxu0 0.0
  %775 = vmatprep.subr.mxu0 0.0
  %776 = vmatpush1.msra.mxu0 %v29
  %777 = vmatprep.subr.mxu0 0.0
  %778 = vmatpush2.msra.mxu0 0.0
  %779 = vmatprep.subr.mxu0 0.0
  %780 = vmatpush2.msra.mxu0 0.0
  %781 = vmatprep.subr.mxu0 0.0
  %782 = vmatpush2.msra.mxu0 0.0
  %783 = vmatprep.subr.mxu0 0.0
  %784 = vmatpush2.msra.mxu0 0.0
  %785 = vmatprep.subr.mxu0 0.0
  %786 = vmatpush2.msra.mxu0 0.0
  %787 = vmatprep.subr.mxu0 0.0
  %788 = vmatpush2.msra.mxu0 0.0
  %789 = vmatprep.subr.mxu0 0.0
  %790 = vmatpush2.msra.mxu0 0.0
  %791 = vmatprep.subr.mxu0 0.0
  %792 = vmatpush2.msra.mxu0 0.0
  %793 = vmatprep.subr.mxu0 0.0
  %794 = vmatpush2.msra.mxu0 0.0
  %795 = vmatprep.subr.mxu0 0.0
  %796 = vmatpush2.msra.mxu0 0.0
  %797 = vmatprep.subr.mxu0 0.0
  %798 = vmatpush2.msra.mxu0 0.0
  %799 = vmatprep.subr.mxu0 0.0
  %800 = vmatpush2.msra.mxu0 0.0
  %801 = vmatprep.subr.mxu0 0.0
  %802 = vmatpush2.msra.mxu0 0.0
  %803 = vmatprep.subr.mxu0 0.0
  %804 = vmatpush2.msra.mxu0 0.0
  %805 = vmatprep.subr.mxu0 0.0
  %806 = vmatpush2.msra.mxu0 0.0
  %807 = vmatprep.subr.mxu0 0.0
  %808 = vmatpush2.msra.mxu0 0.0
  %809 = vmatprep.mubr.f32.mxu0 0.0
  %810 = vmatmul.mubr.f32.gmra.mxu0 %v722
  %v811 = vpop.f32.mrf.mxu0
  %v812 = vadd.f32 0.0, %v811
  %v813 = vpop.f32.mrf.mxu0
  %814 = vmatprep.mubr.f32.mxu0 0.0
  %815 = vmatmul.mubr.f32.gmra.mxu0 %v725
  %v816 = vpop.f32.mrf.mxu0
  %v817 = vadd.f32 0.0, %v816
  %v818 = vpop.f32.mrf.mxu0
  %819 = vmatprep.mubr.f32.mxu0 0.0
  %820 = vmatmul.mubr.f32.gmra.mxu0 %v728
  %v821 = vpop.f32.mrf.mxu0
  %v822 = vadd.f32 0.0, %v821
  %v823 = vpop.f32.mrf.mxu0
  %824 = vmatprep.mubr.f32.mxu0 0.0
  %825 = vmatmul.mubr.f32.gmra.mxu0 %v731
  %v826 = vpop.f32.mrf.mxu0
  %v827 = vadd.f32 0.0, %v826
  %v828 = vpop.f32.mrf.mxu0
  %829 = vmatprep.mubr.f32.mxu0 0.0
  %830 = vmatmul.mubr.f32.gmra.mxu0 %v734
  %v831 = vpop.f32.mrf.mxu0
  %v832 = vadd.f32 0.0, %v831
  %v833 = vpop.f32.mrf.mxu0
  %834 = vmatprep.mubr.f32.mxu0 0.0
  %835 = vmatmul.mubr.f32.gmra.mxu0 %v737
  %v836 = vpop.f32.mrf.mxu0
  %v837 = vadd.f32 0.0, %v836
  %v838 = vpop.f32.mrf.mxu0
  %839 = vmatprep.mubr.f32.mxu0 0.0
  %840 = vmatmul.mubr.f32.gmra.mxu0 %v740
  %v841 = vpop.f32.mrf.mxu0
  %v842 = vadd.f32 0.0, %v841
  %v843 = vpop.f32.mrf.mxu0
  %844 = vmatprep.mubr.f32.mxu0 0.0
  %845 = vmatmul.mubr.f32.gmra.mxu0 %v743
  %v846 = vpop.f32.mrf.mxu0
  %v847 = vadd.f32 0.0, %v846
  %v848 = vpop.f32.mrf.mxu0
  %849 = vdwg.mxu0
  %v850 = vsel %vm86, %v812, %v713
  %v851 = vsel %vm87, %v817, %v714
  %v852 = vsel %vm88, %v822, %v715
  %v853 = vsel %vm89, %v827, %v716
  %v854 = vsel %vm90, %v832, %v717
  %v855 = vsel %vm91, %v837, %v718
  %v856 = vsel %vm92, %v842, %v719
  %v857 = vsel %vm93, %v847, %v720
  %v859 = vsel %vm239, %v850, 0
  %v862 = vsel %vm239, %v851, 0
  %v865 = vsel %vm239, %v852, 0
  %v868 = vsel %vm239, %v853, 0
  %v871 = vsel %vm239, %v854, 0
  %v874 = vsel %vm239, %v855, 0
  %v877 = vsel %vm239, %v856, 0
  %v880 = vsel %vm239, %v857, 0
  %882 = vmatprep.subr.mxu0 0.0
  %883 = vmatpush1.msra.mxu0 0.0
  %884 = vmatprep.subr.mxu0 0.0
  %885 = vmatpush1.msra.mxu0 0.0
  %886 = vmatprep.subr.mxu0 0.0
  %887 = vmatpush1.msra.mxu0 0.0
  %888 = vmatprep.subr.mxu0 0.0
  %889 = vmatpush1.msra.mxu0 0.0
  %890 = vmatprep.subr.mxu0 0.0
  %891 = vmatpush1.msra.mxu0 0.0
  %892 = vmatprep.subr.mxu0 0.0
  %893 = vmatpush1.msra.mxu0 0.0
  %894 = vmatprep.subr.mxu0 0.0
  %895 = vmatpush1.msra.mxu0 0.0
  %896 = vmatprep.subr.mxu0 0.0
  %897 = vmatpush1.msra.mxu0 0.0
  %898 = vmatprep.subr.mxu0 0.0
  %899 = vmatpush1.msra.mxu0 0.0
  %900 = vmatprep.subr.mxu0 0.0
  %901 = vmatpush1.msra.mxu0 0.0
  %902 = vmatprep.subr.mxu0 0.0
  %903 = vmatpush1.msra.mxu0 0.0
  %904 = vmatprep.subr.mxu0 0.0
  %905 = vmatpush1.msra.mxu0 0.0
  %906 = vmatprep.subr.mxu0 0.0
  %907 = vmatpush1.msra.mxu0 0.0
  %908 = vmatprep.subr.mxu0 0.0
  %909 = vmatpush1.msra.mxu0 0.0
  %910 = vmatprep.subr.mxu0 0.0
  %911 = vmatpush1.msra.mxu0 0.0
  %912 = vmatprep.subr.mxu0 0.0
  %913 = vmatpush1.msra.mxu0 %v30
  %914 = vmatprep.subr.mxu0 0.0
  %915 = vmatpush2.msra.mxu0 0.0
  %916 = vmatprep.subr.mxu0 0.0
  %917 = vmatpush2.msra.mxu0 0.0
  %918 = vmatprep.subr.mxu0 0.0
  %919 = vmatpush2.msra.mxu0 0.0
  %920 = vmatprep.subr.mxu0 0.0
  %921 = vmatpush2.msra.mxu0 0.0
  %922 = vmatprep.subr.mxu0 0.0
  %923 = vmatpush2.msra.mxu0 0.0
  %924 = vmatprep.subr.mxu0 0.0
  %925 = vmatpush2.msra.mxu0 0.0
  %926 = vmatprep.subr.mxu0 0.0
  %927 = vmatpush2.msra.mxu0 0.0
  %928 = vmatprep.subr.mxu0 0.0
  %929 = vmatpush2.msra.mxu0 0.0
  %930 = vmatprep.subr.mxu0 0.0
  %931 = vmatpush2.msra.mxu0 0.0
  %932 = vmatprep.subr.mxu0 0.0
  %933 = vmatpush2.msra.mxu0 0.0
  %934 = vmatprep.subr.mxu0 0.0
  %935 = vmatpush2.msra.mxu0 0.0
  %936 = vmatprep.subr.mxu0 0.0
  %937 = vmatpush2.msra.mxu0 0.0
  %938 = vmatprep.subr.mxu0 0.0
  %939 = vmatpush2.msra.mxu0 0.0
  %940 = vmatprep.subr.mxu0 0.0
  %941 = vmatpush2.msra.mxu0 0.0
  %942 = vmatprep.subr.mxu0 0.0
  %943 = vmatpush2.msra.mxu0 0.0
  %944 = vmatprep.subr.mxu0 0.0
  %945 = vmatpush2.msra.mxu0 0.0
  %946 = vmatprep.mubr.f32.mxu0 0.0
  %947 = vmatmul.mubr.f32.gmra.mxu0 %v859
  %v948 = vpop.f32.mrf.mxu0
  %v949 = vadd.f32 0.0, %v948
  %v950 = vpop.f32.mrf.mxu0
  %951 = vmatprep.mubr.f32.mxu0 0.0
  %952 = vmatmul.mubr.f32.gmra.mxu0 %v862
  %v953 = vpop.f32.mrf.mxu0
  %v954 = vadd.f32 0.0, %v953
  %v955 = vpop.f32.mrf.mxu0
  %956 = vmatprep.mubr.f32.mxu0 0.0
  %957 = vmatmul.mubr.f32.gmra.mxu0 %v865
  %v958 = vpop.f32.mrf.mxu0
  %v959 = vadd.f32 0.0, %v958
  %v960 = vpop.f32.mrf.mxu0
  %961 = vmatprep.mubr.f32.mxu0 0.0
  %962 = vmatmul.mubr.f32.gmra.mxu0 %v868
  %v963 = vpop.f32.mrf.mxu0
  %v964 = vadd.f32 0.0, %v963
  %v965 = vpop.f32.mrf.mxu0
  %966 = vmatprep.mubr.f32.mxu0 0.0
  %967 = vmatmul.mubr.f32.gmra.mxu0 %v871
  %v968 = vpop.f32.mrf.mxu0
  %v969 = vadd.f32 0.0, %v968
  %v970 = vpop.f32.mrf.mxu0
  %971 = vmatprep.mubr.f32.mxu0 0.0
  %972 = vmatmul.mubr.f32.gmra.mxu0 %v874
  %v973 = vpop.f32.mrf.mxu0
  %v974 = vadd.f32 0.0, %v973
  %v975 = vpop.f32.mrf.mxu0
  %976 = vmatprep.mubr.f32.mxu0 0.0
  %977 = vmatmul.mubr.f32.gmra.mxu0 %v877
  %v978 = vpop.f32.mrf.mxu0
  %v979 = vadd.f32 0.0, %v978
  %v980 = vpop.f32.mrf.mxu0
  %981 = vmatprep.mubr.f32.mxu0 0.0
  %982 = vmatmul.mubr.f32.gmra.mxu0 %v880
  %v983 = vpop.f32.mrf.mxu0
  %v984 = vadd.f32 0.0, %v983
  %v985 = vpop.f32.mrf.mxu0
  %986 = vdwg.mxu0
  %v987 = vsel %vm102, %v949, %v850
  %v988 = vsel %vm103, %v954, %v851
  %v989 = vsel %vm104, %v959, %v852
  %v990 = vsel %vm105, %v964, %v853
  %v991 = vsel %vm106, %v969, %v854
  %v992 = vsel %vm107, %v974, %v855
  %v993 = vsel %vm108, %v979, %v856
  %v994 = vsel %vm109, %v984, %v857
  %vm995 = vcmask 523264
  %v997 = vsel %vm995, %v20, 0
  %v1000 = vsel %vm995, %v21, 0
  %v1003 = vsel %vm995, %v22, 0
  %v1006 = vsel %vm995, %v23, 0
  %v1009 = vsel %vm995, %v24, 0
  %v1012 = vsel %vm995, %v25, 0
  %v1015 = vsel %vm995, %v26, 0
  %v1018 = vsel %vm995, %v27, 0
  %1020 = vmatprep.subr.mxu0 0.0
  %1021 = vmatpush1.msra.mxu0 0.0
  %1022 = vmatprep.subr.mxu0 0.0
  %1023 = vmatpush1.msra.mxu0 0.0
  %1024 = vmatprep.subr.mxu0 0.0
  %1025 = vmatpush1.msra.mxu0 0.0
  %1026 = vmatprep.subr.mxu0 0.0
  %1027 = vmatpush1.msra.mxu0 0.0
  %1028 = vmatprep.subr.mxu0 0.0
  %1029 = vmatpush1.msra.mxu0 0.0
  %1030 = vmatprep.subr.mxu0 0.0
  %1031 = vmatpush1.msra.mxu0 0.0
  %1032 = vmatprep.subr.mxu0 0.0
  %1033 = vmatpush1.msra.mxu0 0.0
  %1034 = vmatprep.subr.mxu0 0.0
  %1035 = vmatpush1.msra.mxu0 0.0
  %1036 = vmatprep.subr.mxu0 0.0
  %1037 = vmatpush1.msra.mxu0 %v994
  %1038 = vmatprep.subr.mxu0 0.0
  %1039 = vmatpush1.msra.mxu0 %v993
  %1040 = vmatprep.subr.mxu0 0.0
  %1041 = vmatpush1.msra.mxu0 %v992
  %1042 = vmatprep.subr.mxu0 0.0
  %1043 = vmatpush1.msra.mxu0 %v991
  %1044 = vmatprep.subr.mxu0 0.0
  %1045 = vmatpush1.msra.mxu0 %v990
  %1046 = vmatprep.subr.mxu0 0.0
  %1047 = vmatpush1.msra.mxu0 %v989
  %1048 = vmatprep.subr.mxu0 0.0
  %1049 = vmatpush1.msra.mxu0 %v988
  %1050 = vmatprep.subr.mxu0 0.0
  %1051 = vmatpush1.msra.mxu0 %v987
  %1052 = vmatprep.subr.mxu0 0.0
  %1053 = vmatpush2.msra.mxu0 0.0
  %1054 = vmatprep.subr.mxu0 0.0
  %1055 = vmatpush2.msra.mxu0 0.0
  %1056 = vmatprep.subr.mxu0 0.0
  %1057 = vmatpush2.msra.mxu0 0.0
  %1058 = vmatprep.subr.mxu0 0.0
  %1059 = vmatpush2.msra.mxu0 0.0
  %1060 = vmatprep.subr.mxu0 0.0
  %1061 = vmatpush2.msra.mxu0 0.0
  %1062 = vmatprep.subr.mxu0 0.0
  %1063 = vmatpush2.msra.mxu0 0.0
  %1064 = vmatprep.subr.mxu0 0.0
  %1065 = vmatpush2.msra.mxu0 0.0
  %1066 = vmatprep.subr.mxu0 0.0
  %1067 = vmatpush2.msra.mxu0 0.0
  %1068 = vmatprep.subr.mxu0 0.0
  %1069 = vmatpush2.msra.mxu0 0.0
  %1070 = vmatprep.subr.mxu0 0.0
  %1071 = vmatpush2.msra.mxu0 0.0
  %1072 = vmatprep.subr.mxu0 0.0
  %1073 = vmatpush2.msra.mxu0 0.0
  %1074 = vmatprep.subr.mxu0 0.0
  %1075 = vmatpush2.msra.mxu0 0.0
  %1076 = vmatprep.subr.mxu0 0.0
  %1077 = vmatpush2.msra.mxu0 0.0
  %1078 = vmatprep.subr.mxu0 0.0
  %1079 = vmatpush2.msra.mxu0 0.0
  %1080 = vmatprep.subr.mxu0 0.0
  %1081 = vmatpush2.msra.mxu0 0.0
  %1082 = vmatprep.subr.mxu0 0.0
  %1083 = vmatpush2.msra.mxu0 0.0
  %1084 = vmatprep.mubr.f32.mxu0 0.0
  %1085 = vmatmul.mubr.f32.gmra.mxu0 %v997
  %v1086 = vpop.f32.mrf.mxu0
  %v1087 = vadd.f32 0.0, %v1086
  %v1088 = vpop.f32.mrf.mxu0
  %1089 = vmatprep.mubr.f32.mxu0 0.0
  %1090 = vmatmul.mubr.f32.gmra.mxu0 %v1000
  %v1091 = vpop.f32.mrf.mxu0
  %v1092 = vadd.f32 0.0, %v1091
  %v1093 = vpop.f32.mrf.mxu0
  %1094 = vmatprep.mubr.f32.mxu0 0.0
  %1095 = vmatmul.mubr.f32.gmra.mxu0 %v1003
  %v1096 = vpop.f32.mrf.mxu0
  %v1097 = vadd.f32 0.0, %v1096
  %v1098 = vpop.f32.mrf.mxu0
  %1099 = vmatprep.mubr.f32.mxu0 0.0
  %1100 = vmatmul.mubr.f32.gmra.mxu0 %v1006
  %v1101 = vpop.f32.mrf.mxu0
  %v1102 = vadd.f32 0.0, %v1101
  %v1103 = vpop.f32.mrf.mxu0
  %1104 = vmatprep.mubr.f32.mxu0 0.0
  %1105 = vmatmul.mubr.f32.gmra.mxu0 %v1009
  %v1106 = vpop.f32.mrf.mxu0
  %v1107 = vadd.f32 0.0, %v1106
  %v1108 = vpop.f32.mrf.mxu0
  %1109 = vmatprep.mubr.f32.mxu0 0.0
  %1110 = vmatmul.mubr.f32.gmra.mxu0 %v1012
  %v1111 = vpop.f32.mrf.mxu0
  %v1112 = vadd.f32 0.0, %v1111
  %v1113 = vpop.f32.mrf.mxu0
  %1114 = vmatprep.mubr.f32.mxu0 0.0
  %1115 = vmatmul.mubr.f32.gmra.mxu0 %v1015
  %v1116 = vpop.f32.mrf.mxu0
  %v1117 = vadd.f32 0.0, %v1116
  %v1118 = vpop.f32.mrf.mxu0
  %1119 = vmatprep.mubr.f32.mxu0 0.0
  %1120 = vmatmul.mubr.f32.gmra.mxu0 %v1018
  %v1121 = vpop.f32.mrf.mxu0
  %v1122 = vadd.f32 0.0, %v1121
  %v1123 = vpop.f32.mrf.mxu0
  %1124 = vdwg.mxu0
  %v1125 = vsel %vm118, 0.0, %v1087
  %v1126 = vsel %vm119, 0.0, %v1092
  %v1127 = vsel %vm120, 0.0, %v1097
  %v1128 = vsel %vm121, 0.0, %v1102
  %v1129 = vsel %vm122, 0.0, %v1107
  %v1130 = vsel %vm123, 0.0, %v1112
  %v1131 = vsel %vm124, 0.0, %v1117
  %v1132 = vsel %vm125, 0.0, %v1122
  %v1133 = vsel %vm110, %v987, %v1125
  %v1134 = vsel %vm111, %v988, %v1126
  %v1135 = vsel %vm112, %v989, %v1127
  %v1136 = vsel %vm113, %v990, %v1128
  %v1137 = vsel %vm114, %v991, %v1129
  %v1138 = vsel %vm115, %v992, %v1130
  %v1139 = vsel %vm116, %v993, %v1131
  %v1140 = vsel %vm117, %v994, %v1132
  %1142 = vrot.lane.b32.xlu0 %v211, 96
  %v1143 = vpop.permute.xlu0 %1142
  %v1145 = vsel %vm239, %v228, 0
  %v1147 = vsel %vm239, %v1143, 0
  %1149 = vmatprep.subr.mxu0 0.0
  %1150 = vmatpush1.xpose.msra.mxu0 0.0
  %1151 = vmatprep.subr.mxu0 0.0
  %1152 = vmatpush1.xpose.msra.mxu0 0.0
  %1153 = vmatprep.subr.mxu0 0.0
  %1154 = vmatpush1.xpose.msra.mxu0 0.0
  %1155 = vmatprep.subr.mxu0 0.0
  %1156 = vmatpush1.xpose.msra.mxu0 0.0
  %1157 = vmatprep.subr.mxu0 0.0
  %1158 = vmatpush1.xpose.msra.mxu0 0.0
  %1159 = vmatprep.subr.mxu0 0.0
  %1160 = vmatpush1.xpose.msra.mxu0 0.0
  %1161 = vmatprep.subr.mxu0 0.0
  %1162 = vmatpush1.xpose.msra.mxu0 0.0
  %1163 = vmatprep.subr.mxu0 0.0
  %1164 = vmatpush1.xpose.msra.mxu0 0.0
  %1165 = vmatprep.subr.mxu0 0.0
  %1166 = vmatpush1.xpose.msra.mxu0 0.0
  %1167 = vmatprep.subr.mxu0 0.0
  %1168 = vmatpush1.xpose.msra.mxu0 0.0
  %1169 = vmatprep.subr.mxu0 0.0
  %1170 = vmatpush1.xpose.msra.mxu0 0.0
  %1171 = vmatprep.subr.mxu0 0.0
  %1172 = vmatpush1.xpose.msra.mxu0 0.0
  %1173 = vmatprep.subr.mxu0 0.0
  %1174 = vmatpush1.xpose.msra.mxu0 0.0
  %1175 = vmatprep.subr.mxu0 0.0
  %1176 = vmatpush1.xpose.msra.mxu0 0.0
  %1177 = vmatprep.subr.mxu0 0.0
  %1178 = vmatpush1.xpose.msra.mxu0 0.0
  %1179 = vmatprep.subr.mxu0 0.0
  %1180 = vmatpush1.xpose.msra.mxu0 %v1147
  %1181 = vmatprep.subr.mxu0 0.0
  %1182 = vmatpush2.xpose.msra.mxu0 0.0
  %1183 = vmatprep.subr.mxu0 0.0
  %1184 = vmatpush2.xpose.msra.mxu0 0.0
  %1185 = vmatprep.subr.mxu0 0.0
  %1186 = vmatpush2.xpose.msra.mxu0 0.0
  %1187 = vmatprep.subr.mxu0 0.0
  %1188 = vmatpush2.xpose.msra.mxu0 0.0
  %1189 = vmatprep.subr.mxu0 0.0
  %1190 = vmatpush2.xpose.msra.mxu0 0.0
  %1191 = vmatprep.subr.mxu0 0.0
  %1192 = vmatpush2.xpose.msra.mxu0 0.0
  %1193 = vmatprep.subr.mxu0 0.0
  %1194 = vmatpush2.xpose.msra.mxu0 0.0
  %1195 = vmatprep.subr.mxu0 0.0
  %1196 = vmatpush2.xpose.msra.mxu0 0.0
  %1197 = vmatprep.subr.mxu0 0.0
  %1198 = vmatpush2.xpose.msra.mxu0 0.0
  %1199 = vmatprep.subr.mxu0 0.0
  %1200 = vmatpush2.xpose.msra.mxu0 0.0
  %1201 = vmatprep.subr.mxu0 0.0
  %1202 = vmatpush2.xpose.msra.mxu0 0.0
  %1203 = vmatprep.subr.mxu0 0.0
  %1204 = vmatpush2.xpose.msra.mxu0 0.0
  %1205 = vmatprep.subr.mxu0 0.0
  %1206 = vmatpush2.xpose.msra.mxu0 0.0
  %1207 = vmatprep.subr.mxu0 0.0
  %1208 = vmatpush2.xpose.msra.mxu0 0.0
  %1209 = vmatprep.subr.mxu0 0.0
  %1210 = vmatpush2.xpose.msra.mxu0 0.0
  %1211 = vmatprep.subr.mxu0 0.0
  %1212 = vmatpush2.xpose.msra.mxu0 0.0
  %1213 = vmatprep.mubr.f32.mxu0 0.0
  %1214 = vmatmul.mubr.f32.gmra.mxu0 %v1145
  %v1215 = vpop.f32.mrf.mxu0
  %v1216 = vadd.f32 0.0, %v1215
  %v1217 = vpop.f32.mrf.mxu0
  %1218 = vdwg.mxu0
  %1220 = vrot.lane.b32.xlu0 %v216, 96
  %v1221 = vpop.permute.xlu0 %1220
  %v1223 = vsel %vm239, %v229, 0
  %v1225 = vsel %vm239, %v1221, 0
  %1227 = vmatprep.subr.mxu0 0.0
  %1228 = vmatpush1.xpose.msra.mxu0 0.0
  %1229 = vmatprep.subr.mxu0 0.0
  %1230 = vmatpush1.xpose.msra.mxu0 0.0
  %1231 = vmatprep.subr.mxu0 0.0
  %1232 = vmatpush1.xpose.msra.mxu0 0.0
  %1233 = vmatprep.subr.mxu0 0.0
  %1234 = vmatpush1.xpose.msra.mxu0 0.0
  %1235 = vmatprep.subr.mxu0 0.0
  %1236 = vmatpush1.xpose.msra.mxu0 0.0
  %1237 = vmatprep.subr.mxu0 0.0
  %1238 = vmatpush1.xpose.msra.mxu0 0.0
  %1239 = vmatprep.subr.mxu0 0.0
  %1240 = vmatpush1.xpose.msra.mxu0 0.0
  %1241 = vmatprep.subr.mxu0 0.0
  %1242 = vmatpush1.xpose.msra.mxu0 0.0
  %1243 = vmatprep.subr.mxu0 0.0
  %1244 = vmatpush1.xpose.msra.mxu0 0.0
  %1245 = vmatprep.subr.mxu0 0.0
  %1246 = vmatpush1.xpose.msra.mxu0 0.0
  %1247 = vmatprep.subr.mxu0 0.0
  %1248 = vmatpush1.xpose.msra.mxu0 0.0
  %1249 = vmatprep.subr.mxu0 0.0
  %1250 = vmatpush1.xpose.msra.mxu0 0.0
  %1251 = vmatprep.subr.mxu0 0.0
  %1252 = vmatpush1.xpose.msra.mxu0 0.0
  %1253 = vmatprep.subr.mxu0 0.0
  %1254 = vmatpush1.xpose.msra.mxu0 0.0
  %1255 = vmatprep.subr.mxu0 0.0
  %1256 = vmatpush1.xpose.msra.mxu0 0.0
  %1257 = vmatprep.subr.mxu0 0.0
  %1258 = vmatpush1.xpose.msra.mxu0 %v1225
  %1259 = vmatprep.subr.mxu0 0.0
  %1260 = vmatpush2.xpose.msra.mxu0 0.0
  %1261 = vmatprep.subr.mxu0 0.0
  %1262 = vmatpush2.xpose.msra.mxu0 0.0
  %1263 = vmatprep.subr.mxu0 0.0
  %1264 = vmatpush2.xpose.msra.mxu0 0.0
  %1265 = vmatprep.subr.mxu0 0.0
  %1266 = vmatpush2.xpose.msra.mxu0 0.0
  %1267 = vmatprep.subr.mxu0 0.0
  %1268 = vmatpush2.xpose.msra.mxu0 0.0
  %1269 = vmatprep.subr.mxu0 0.0
  %1270 = vmatpush2.xpose.msra.mxu0 0.0
  %1271 = vmatprep.subr.mxu0 0.0
  %1272 = vmatpush2.xpose.msra.mxu0 0.0
  %1273 = vmatprep.subr.mxu0 0.0
  %1274 = vmatpush2.xpose.msra.mxu0 0.0
  %1275 = vmatprep.subr.mxu0 0.0
  %1276 = vmatpush2.xpose.msra.mxu0 0.0
  %1277 = vmatprep.subr.mxu0 0.0
  %1278 = vmatpush2.xpose.msra.mxu0 0.0
  %1279 = vmatprep.subr.mxu0 0.0
  %1280 = vmatpush2.xpose.msra.mxu0 0.0
  %1281 = vmatprep.subr.mxu0 0.0
  %1282 = vmatpush2.xpose.msra.mxu0 0.0
  %1283 = vmatprep.subr.mxu0 0.0
  %1284 = vmatpush2.xpose.msra.mxu0 0.0
  %1285 = vmatprep.subr.mxu0 0.0
  %1286 = vmatpush2.xpose.msra.mxu0 0.0
  %1287 = vmatprep.subr.mxu0 0.0
  %1288 = vmatpush2.xpose.msra.mxu0 0.0
  %1289 = vmatprep.subr.mxu0 0.0
  %1290 = vmatpush2.xpose.msra.mxu0 0.0
  %1291 = vmatprep.mubr.f32.mxu0 0.0
  %1292 = vmatmul.mubr.f32.gmra.mxu0 %v1223
  %v1293 = vpop.f32.mrf.mxu0
  %v1294 = vadd.f32 0.0, %v1293
  %v1295 = vpop.f32.mrf.mxu0
  %1296 = vdwg.mxu0
  %1297 = vrot.lane.b32.xlu0 %v228, 120
  %v1298 = vpop.permute.xlu0 %1297
  %1299 = vrot.lane.b32.xlu0 %v211, 88
  %v1300 = vpop.permute.xlu0 %1299
  %v1301 = vsel %vm239, %v1298, 0
  %v1303 = vsel %vm239, %v1300, 0
  %1305 = vmatprep.subr.mxu0 0.0
  %1306 = vmatpush1.xpose.msra.mxu0 0.0
  %1307 = vmatprep.subr.mxu0 0.0
  %1308 = vmatpush1.xpose.msra.mxu0 0.0
  %1309 = vmatprep.subr.mxu0 0.0
  %1310 = vmatpush1.xpose.msra.mxu0 0.0
  %1311 = vmatprep.subr.mxu0 0.0
  %1312 = vmatpush1.xpose.msra.mxu0 0.0
  %1313 = vmatprep.subr.mxu0 0.0
  %1314 = vmatpush1.xpose.msra.mxu0 0.0
  %1315 = vmatprep.subr.mxu0 0.0
  %1316 = vmatpush1.xpose.msra.mxu0 0.0
  %1317 = vmatprep.subr.mxu0 0.0
  %1318 = vmatpush1.xpose.msra.mxu0 0.0
  %1319 = vmatprep.subr.mxu0 0.0
  %1320 = vmatpush1.xpose.msra.mxu0 0.0
  %1321 = vmatprep.subr.mxu0 0.0
  %1322 = vmatpush1.xpose.msra.mxu0 0.0
  %1323 = vmatprep.subr.mxu0 0.0
  %1324 = vmatpush1.xpose.msra.mxu0 0.0
  %1325 = vmatprep.subr.mxu0 0.0
  %1326 = vmatpush1.xpose.msra.mxu0 0.0
  %1327 = vmatprep.subr.mxu0 0.0
  %1328 = vmatpush1.xpose.msra.mxu0 0.0
  %1329 = vmatprep.subr.mxu0 0.0
  %1330 = vmatpush1.xpose.msra.mxu0 0.0
  %1331 = vmatprep.subr.mxu0 0.0
  %1332 = vmatpush1.xpose.msra.mxu0 0.0
  %1333 = vmatprep.subr.mxu0 0.0
  %1334 = vmatpush1.xpose.msra.mxu0 0.0
  %1335 = vmatprep.subr.mxu0 0.0
  %1336 = vmatpush1.xpose.msra.mxu0 %v1303
  %1337 = vmatprep.subr.mxu0 0.0
  %1338 = vmatpush2.xpose.msra.mxu0 0.0
  %1339 = vmatprep.subr.mxu0 0.0
  %1340 = vmatpush2.xpose.msra.mxu0 0.0
  %1341 = vmatprep.subr.mxu0 0.0
  %1342 = vmatpush2.xpose.msra.mxu0 0.0
  %1343 = vmatprep.subr.mxu0 0.0
  %1344 = vmatpush2.xpose.msra.mxu0 0.0
  %1345 = vmatprep.subr.mxu0 0.0
  %1346 = vmatpush2.xpose.msra.mxu0 0.0
  %1347 = vmatprep.subr.mxu0 0.0
  %1348 = vmatpush2.xpose.msra.mxu0 0.0
  %1349 = vmatprep.subr.mxu0 0.0
  %1350 = vmatpush2.xpose.msra.mxu0 0.0
  %1351 = vmatprep.subr.mxu0 0.0
  %1352 = vmatpush2.xpose.msra.mxu0 0.0
  %1353 = vmatprep.subr.mxu0 0.0
  %1354 = vmatpush2.xpose.msra.mxu0 0.0
  %1355 = vmatprep.subr.mxu0 0.0
  %1356 = vmatpush2.xpose.msra.mxu0 0.0
  %1357 = vmatprep.subr.mxu0 0.0
  %1358 = vmatpush2.xpose.msra.mxu0 0.0
  %1359 = vmatprep.subr.mxu0 0.0
  %1360 = vmatpush2.xpose.msra.mxu0 0.0
  %1361 = vmatprep.subr.mxu0 0.0
  %1362 = vmatpush2.xpose.msra.mxu0 0.0
  %1363 = vmatprep.subr.mxu0 0.0
  %1364 = vmatpush2.xpose.msra.mxu0 0.0
  %1365 = vmatprep.subr.mxu0 0.0
  %1366 = vmatpush2.xpose.msra.mxu0 0.0
  %1367 = vmatprep.subr.mxu0 0.0
  %1368 = vmatpush2.xpose.msra.mxu0 0.0
  %1369 = vmatprep.mubr.f32.mxu0 0.0
  %1370 = vmatmul.mubr.f32.gmra.mxu0 %v1301
  %v1371 = vpop.f32.mrf.mxu0
  %v1372 = vadd.f32 0.0, %v1371
  %v1373 = vpop.f32.mrf.mxu0
  %1374 = vdwg.mxu0
  %1375 = vrot.lane.b32.xlu0 %v229, 120
  %v1376 = vpop.permute.xlu0 %1375
  %1377 = vrot.lane.b32.xlu0 %v216, 88
  %v1378 = vpop.permute.xlu0 %1377
  %v1379 = vsel %vm239, %v1376, 0
  %v1381 = vsel %vm239, %v1378, 0
  %1383 = vmatprep.subr.mxu0 0.0
  %1384 = vmatpush1.xpose.msra.mxu0 0.0
  %1385 = vmatprep.subr.mxu0 0.0
  %1386 = vmatpush1.xpose.msra.mxu0 0.0
  %1387 = vmatprep.subr.mxu0 0.0
  %1388 = vmatpush1.xpose.msra.mxu0 0.0
  %1389 = vmatprep.subr.mxu0 0.0
  %1390 = vmatpush1.xpose.msra.mxu0 0.0
  %1391 = vmatprep.subr.mxu0 0.0
  %1392 = vmatpush1.xpose.msra.mxu0 0.0
  %1393 = vmatprep.subr.mxu0 0.0
  %1394 = vmatpush1.xpose.msra.mxu0 0.0
  %1395 = vmatprep.subr.mxu0 0.0
  %1396 = vmatpush1.xpose.msra.mxu0 0.0
  %1397 = vmatprep.subr.mxu0 0.0
  %1398 = vmatpush1.xpose.msra.mxu0 0.0
  %1399 = vmatprep.subr.mxu0 0.0
  %1400 = vmatpush1.xpose.msra.mxu0 0.0
  %1401 = vmatprep.subr.mxu0 0.0
  %1402 = vmatpush1.xpose.msra.mxu0 0.0
  %1403 = vmatprep.subr.mxu0 0.0
  %1404 = vmatpush1.xpose.msra.mxu0 0.0
  %1405 = vmatprep.subr.mxu0 0.0
  %1406 = vmatpush1.xpose.msra.mxu0 0.0
  %1407 = vmatprep.subr.mxu0 0.0
  %1408 = vmatpush1.xpose.msra.mxu0 0.0
  %1409 = vmatprep.subr.mxu0 0.0
  %1410 = vmatpush1.xpose.msra.mxu0 0.0
  %1411 = vmatprep.subr.mxu0 0.0
  %1412 = vmatpush1.xpose.msra.mxu0 0.0
  %1413 = vmatprep.subr.mxu0 0.0
  %1414 = vmatpush1.xpose.msra.mxu0 %v1381
  %1415 = vmatprep.subr.mxu0 0.0
  %1416 = vmatpush2.xpose.msra.mxu0 0.0
  %1417 = vmatprep.subr.mxu0 0.0
  %1418 = vmatpush2.xpose.msra.mxu0 0.0
  %1419 = vmatprep.subr.mxu0 0.0
  %1420 = vmatpush2.xpose.msra.mxu0 0.0
  %1421 = vmatprep.subr.mxu0 0.0
  %1422 = vmatpush2.xpose.msra.mxu0 0.0
  %1423 = vmatprep.subr.mxu0 0.0
  %1424 = vmatpush2.xpose.msra.mxu0 0.0
  %1425 = vmatprep.subr.mxu0 0.0
  %1426 = vmatpush2.xpose.msra.mxu0 0.0
  %1427 = vmatprep.subr.mxu0 0.0
  %1428 = vmatpush2.xpose.msra.mxu0 0.0
  %1429 = vmatprep.subr.mxu0 0.0
  %1430 = vmatpush2.xpose.msra.mxu0 0.0
  %1431 = vmatprep.subr.mxu0 0.0
  %1432 = vmatpush2.xpose.msra.mxu0 0.0
  %1433 = vmatprep.subr.mxu0 0.0
  %1434 = vmatpush2.xpose.msra.mxu0 0.0
  %1435 = vmatprep.subr.mxu0 0.0
  %1436 = vmatpush2.xpose.msra.mxu0 0.0
  %1437 = vmatprep.subr.mxu0 0.0
  %1438 = vmatpush2.xpose.msra.mxu0 0.0
  %1439 = vmatprep.subr.mxu0 0.0
  %1440 = vmatpush2.xpose.msra.mxu0 0.0
  %1441 = vmatprep.subr.mxu0 0.0
  %1442 = vmatpush2.xpose.msra.mxu0 0.0
  %1443 = vmatprep.subr.mxu0 0.0
  %1444 = vmatpush2.xpose.msra.mxu0 0.0
  %1445 = vmatprep.subr.mxu0 0.0
  %1446 = vmatpush2.xpose.msra.mxu0 0.0
  %1447 = vmatprep.mubr.f32.mxu0 0.0
  %1448 = vmatmul.mubr.f32.gmra.mxu0 %v1379
  %v1449 = vpop.f32.mrf.mxu0
  %v1450 = vadd.f32 0.0, %v1449
  %v1451 = vpop.f32.mrf.mxu0
  %1452 = vdwg.mxu0
  %1453 = vrot.lane.b32.xlu0 %v228, 112
  %v1454 = vpop.permute.xlu0 %1453
  %1455 = vrot.lane.b32.xlu0 %v211, 80
  %v1456 = vpop.permute.xlu0 %1455
  %v1457 = vsel %vm239, %v1454, 0
  %v1459 = vsel %vm239, %v1456, 0
  %1461 = vmatprep.subr.mxu0 0.0
  %1462 = vmatpush1.xpose.msra.mxu0 0.0
  %1463 = vmatprep.subr.mxu0 0.0
  %1464 = vmatpush1.xpose.msra.mxu0 0.0
  %1465 = vmatprep.subr.mxu0 0.0
  %1466 = vmatpush1.xpose.msra.mxu0 0.0
  %1467 = vmatprep.subr.mxu0 0.0
  %1468 = vmatpush1.xpose.msra.mxu0 0.0
  %1469 = vmatprep.subr.mxu0 0.0
  %1470 = vmatpush1.xpose.msra.mxu0 0.0
  %1471 = vmatprep.subr.mxu0 0.0
  %1472 = vmatpush1.xpose.msra.mxu0 0.0
  %1473 = vmatprep.subr.mxu0 0.0
  %1474 = vmatpush1.xpose.msra.mxu0 0.0
  %1475 = vmatprep.subr.mxu0 0.0
  %1476 = vmatpush1.xpose.msra.mxu0 0.0
  %1477 = vmatprep.subr.mxu0 0.0
  %1478 = vmatpush1.xpose.msra.mxu0 0.0
  %1479 = vmatprep.subr.mxu0 0.0
  %1480 = vmatpush1.xpose.msra.mxu0 0.0
  %1481 = vmatprep.subr.mxu0 0.0
  %1482 = vmatpush1.xpose.msra.mxu0 0.0
  %1483 = vmatprep.subr.mxu0 0.0
  %1484 = vmatpush1.xpose.msra.mxu0 0.0
  %1485 = vmatprep.subr.mxu0 0.0
  %1486 = vmatpush1.xpose.msra.mxu0 0.0
  %1487 = vmatprep.subr.mxu0 0.0
  %1488 = vmatpush1.xpose.msra.mxu0 0.0
  %1489 = vmatprep.subr.mxu0 0.0
  %1490 = vmatpush1.xpose.msra.mxu0 0.0
  %1491 = vmatprep.subr.mxu0 0.0
  %1492 = vmatpush1.xpose.msra.mxu0 %v1459
  %1493 = vmatprep.subr.mxu0 0.0
  %1494 = vmatpush2.xpose.msra.mxu0 0.0
  %1495 = vmatprep.subr.mxu0 0.0
  %1496 = vmatpush2.xpose.msra.mxu0 0.0
  %1497 = vmatprep.subr.mxu0 0.0
  %1498 = vmatpush2.xpose.msra.mxu0 0.0
  %1499 = vmatprep.subr.mxu0 0.0
  %1500 = vmatpush2.xpose.msra.mxu0 0.0
  %1501 = vmatprep.subr.mxu0 0.0
  %1502 = vmatpush2.xpose.msra.mxu0 0.0
  %1503 = vmatprep.subr.mxu0 0.0
  %1504 = vmatpush2.xpose.msra.mxu0 0.0
  %1505 = vmatprep.subr.mxu0 0.0
  %1506 = vmatpush2.xpose.msra.mxu0 0.0
  %1507 = vmatprep.subr.mxu0 0.0
  %1508 = vmatpush2.xpose.msra.mxu0 0.0
  %1509 = vmatprep.subr.mxu0 0.0
  %1510 = vmatpush2.xpose.msra.mxu0 0.0
  %1511 = vmatprep.subr.mxu0 0.0
  %1512 = vmatpush2.xpose.msra.mxu0 0.0
  %1513 = vmatprep.subr.mxu0 0.0
  %1514 = vmatpush2.xpose.msra.mxu0 0.0
  %1515 = vmatprep.subr.mxu0 0.0
  %1516 = vmatpush2.xpose.msra.mxu0 0.0
  %1517 = vmatprep.subr.mxu0 0.0
  %1518 = vmatpush2.xpose.msra.mxu0 0.0
  %1519 = vmatprep.subr.mxu0 0.0
  %1520 = vmatpush2.xpose.msra.mxu0 0.0
  %1521 = vmatprep.subr.mxu0 0.0
  %1522 = vmatpush2.xpose.msra.mxu0 0.0
  %1523 = vmatprep.subr.mxu0 0.0
  %1524 = vmatpush2.xpose.msra.mxu0 0.0
  %1525 = vmatprep.mubr.f32.mxu0 0.0
  %1526 = vmatmul.mubr.f32.gmra.mxu0 %v1457
  %v1527 = vpop.f32.mrf.mxu0
  %v1528 = vadd.f32 0.0, %v1527
  %v1529 = vpop.f32.mrf.mxu0
  %1530 = vdwg.mxu0
  %1531 = vrot.lane.b32.xlu0 %v229, 112
  %v1532 = vpop.permute.xlu0 %1531
  %1533 = vrot.lane.b32.xlu0 %v216, 80
  %v1534 = vpop.permute.xlu0 %1533
  %v1535 = vsel %vm239, %v1532, 0
  %v1537 = vsel %vm239, %v1534, 0
  %1539 = vmatprep.subr.mxu0 0.0
  %1540 = vmatpush1.xpose.msra.mxu0 0.0
  %1541 = vmatprep.subr.mxu0 0.0
  %1542 = vmatpush1.xpose.msra.mxu0 0.0
  %1543 = vmatprep.subr.mxu0 0.0
  %1544 = vmatpush1.xpose.msra.mxu0 0.0
  %1545 = vmatprep.subr.mxu0 0.0
  %1546 = vmatpush1.xpose.msra.mxu0 0.0
  %1547 = vmatprep.subr.mxu0 0.0
  %1548 = vmatpush1.xpose.msra.mxu0 0.0
  %1549 = vmatprep.subr.mxu0 0.0
  %1550 = vmatpush1.xpose.msra.mxu0 0.0
  %1551 = vmatprep.subr.mxu0 0.0
  %1552 = vmatpush1.xpose.msra.mxu0 0.0
  %1553 = vmatprep.subr.mxu0 0.0
  %1554 = vmatpush1.xpose.msra.mxu0 0.0
  %1555 = vmatprep.subr.mxu0 0.0
  %1556 = vmatpush1.xpose.msra.mxu0 0.0
  %1557 = vmatprep.subr.mxu0 0.0
  %1558 = vmatpush1.xpose.msra.mxu0 0.0
  %1559 = vmatprep.subr.mxu0 0.0
  %1560 = vmatpush1.xpose.msra.mxu0 0.0
  %1561 = vmatprep.subr.mxu0 0.0
  %1562 = vmatpush1.xpose.msra.mxu0 0.0
  %1563 = vmatprep.subr.mxu0 0.0
  %1564 = vmatpush1.xpose.msra.mxu0 0.0
  %1565 = vmatprep.subr.mxu0 0.0
  %1566 = vmatpush1.xpose.msra.mxu0 0.0
  %1567 = vmatprep.subr.mxu0 0.0
  %1568 = vmatpush1.xpose.msra.mxu0 0.0
  %1569 = vmatprep.subr.mxu0 0.0
  %1570 = vmatpush1.xpose.msra.mxu0 %v1537
  %1571 = vmatprep.subr.mxu0 0.0
  %1572 = vmatpush2.xpose.msra.mxu0 0.0
  %1573 = vmatprep.subr.mxu0 0.0
  %1574 = vmatpush2.xpose.msra.mxu0 0.0
  %1575 = vmatprep.subr.mxu0 0.0
  %1576 = vmatpush2.xpose.msra.mxu0 0.0
  %1577 = vmatprep.subr.mxu0 0.0
  %1578 = vmatpush2.xpose.msra.mxu0 0.0
  %1579 = vmatprep.subr.mxu0 0.0
  %1580 = vmatpush2.xpose.msra.mxu0 0.0
  %1581 = vmatprep.subr.mxu0 0.0
  %1582 = vmatpush2.xpose.msra.mxu0 0.0
  %1583 = vmatprep.subr.mxu0 0.0
  %1584 = vmatpush2.xpose.msra.mxu0 0.0
  %1585 = vmatprep.subr.mxu0 0.0
  %1586 = vmatpush2.xpose.msra.mxu0 0.0
  %1587 = vmatprep.subr.mxu0 0.0
  %1588 = vmatpush2.xpose.msra.mxu0 0.0
  %1589 = vmatprep.subr.mxu0 0.0
  %1590 = vmatpush2.xpose.msra.mxu0 0.0
  %1591 = vmatprep.subr.mxu0 0.0
  %1592 = vmatpush2.xpose.msra.mxu0 0.0
  %1593 = vmatprep.subr.mxu0 0.0
  %1594 = vmatpush2.xpose.msra.mxu0 0.0
  %1595 = vmatprep.subr.mxu0 0.0
  %1596 = vmatpush2.xpose.msra.mxu0 0.0
  %1597 = vmatprep.subr.mxu0 0.0
  %1598 = vmatpush2.xpose.msra.mxu0 0.0
  %1599 = vmatprep.subr.mxu0 0.0
  %1600 = vmatpush2.xpose.msra.mxu0 0.0
  %1601 = vmatprep.subr.mxu0 0.0
  %1602 = vmatpush2.xpose.msra.mxu0 0.0
  %1603 = vmatprep.mubr.f32.mxu0 0.0
  %1604 = vmatmul.mubr.f32.gmra.mxu0 %v1535
  %v1605 = vpop.f32.mrf.mxu0
  %v1606 = vadd.f32 0.0, %v1605
  %v1607 = vpop.f32.mrf.mxu0
  %1608 = vdwg.mxu0
  %1609 = vrot.lane.b32.xlu0 %v228, 104
  %v1610 = vpop.permute.xlu0 %1609
  %1611 = vrot.lane.b32.xlu0 %v211, 72
  %v1612 = vpop.permute.xlu0 %1611
  %v1613 = vsel %vm239, %v1610, 0
  %v1615 = vsel %vm239, %v1612, 0
  %1617 = vmatprep.subr.mxu0 0.0
  %1618 = vmatpush1.xpose.msra.mxu0 0.0
  %1619 = vmatprep.subr.mxu0 0.0
  %1620 = vmatpush1.xpose.msra.mxu0 0.0
  %1621 = vmatprep.subr.mxu0 0.0
  %1622 = vmatpush1.xpose.msra.mxu0 0.0
  %1623 = vmatprep.subr.mxu0 0.0
  %1624 = vmatpush1.xpose.msra.mxu0 0.0
  %1625 = vmatprep.subr.mxu0 0.0
  %1626 = vmatpush1.xpose.msra.mxu0 0.0
  %1627 = vmatprep.subr.mxu0 0.0
  %1628 = vmatpush1.xpose.msra.mxu0 0.0
  %1629 = vmatprep.subr.mxu0 0.0
  %1630 = vmatpush1.xpose.msra.mxu0 0.0
  %1631 = vmatprep.subr.mxu0 0.0
  %1632 = vmatpush1.xpose.msra.mxu0 0.0
  %1633 = vmatprep.subr.mxu0 0.0
  %1634 = vmatpush1.xpose.msra.mxu0 0.0
  %1635 = vmatprep.subr.mxu0 0.0
  %1636 = vmatpush1.xpose.msra.mxu0 0.0
  %1637 = vmatprep.subr.mxu0 0.0
  %1638 = vmatpush1.xpose.msra.mxu0 0.0
  %1639 = vmatprep.subr.mxu0 0.0
  %1640 = vmatpush1.xpose.msra.mxu0 0.0
  %1641 = vmatprep.subr.mxu0 0.0
  %1642 = vmatpush1.xpose.msra.mxu0 0.0
  %1643 = vmatprep.subr.mxu0 0.0
  %1644 = vmatpush1.xpose.msra.mxu0 0.0
  %1645 = vmatprep.subr.mxu0 0.0
  %1646 = vmatpush1.xpose.msra.mxu0 0.0
  %1647 = vmatprep.subr.mxu0 0.0
  %1648 = vmatpush1.xpose.msra.mxu0 %v1615
  %1649 = vmatprep.subr.mxu0 0.0
  %1650 = vmatpush2.xpose.msra.mxu0 0.0
  %1651 = vmatprep.subr.mxu0 0.0
  %1652 = vmatpush2.xpose.msra.mxu0 0.0
  %1653 = vmatprep.subr.mxu0 0.0
  %1654 = vmatpush2.xpose.msra.mxu0 0.0
  %1655 = vmatprep.subr.mxu0 0.0
  %1656 = vmatpush2.xpose.msra.mxu0 0.0
  %1657 = vmatprep.subr.mxu0 0.0
  %1658 = vmatpush2.xpose.msra.mxu0 0.0
  %1659 = vmatprep.subr.mxu0 0.0
  %1660 = vmatpush2.xpose.msra.mxu0 0.0
  %1661 = vmatprep.subr.mxu0 0.0
  %1662 = vmatpush2.xpose.msra.mxu0 0.0
  %1663 = vmatprep.subr.mxu0 0.0
  %1664 = vmatpush2.xpose.msra.mxu0 0.0
  %1665 = vmatprep.subr.mxu0 0.0
  %1666 = vmatpush2.xpose.msra.mxu0 0.0
  %1667 = vmatprep.subr.mxu0 0.0
  %1668 = vmatpush2.xpose.msra.mxu0 0.0
  %1669 = vmatprep.subr.mxu0 0.0
  %1670 = vmatpush2.xpose.msra.mxu0 0.0
  %1671 = vmatprep.subr.mxu0 0.0
  %1672 = vmatpush2.xpose.msra.mxu0 0.0
  %1673 = vmatprep.subr.mxu0 0.0
  %1674 = vmatpush2.xpose.msra.mxu0 0.0
  %1675 = vmatprep.subr.mxu0 0.0
  %1676 = vmatpush2.xpose.msra.mxu0 0.0
  %1677 = vmatprep.subr.mxu0 0.0
  %1678 = vmatpush2.xpose.msra.mxu0 0.0
  %1679 = vmatprep.subr.mxu0 0.0
  %1680 = vmatpush2.xpose.msra.mxu0 0.0
  %1681 = vmatprep.mubr.f32.mxu0 0.0
  %1682 = vmatmul.mubr.f32.gmra.mxu0 %v1613
  %v1683 = vpop.f32.mrf.mxu0
  %v1684 = vadd.f32 0.0, %v1683
  %v1685 = vpop.f32.mrf.mxu0
  %1686 = vdwg.mxu0
  %1687 = vrot.lane.b32.xlu0 %v229, 104
  %v1688 = vpop.permute.xlu0 %1687
  %1689 = vrot.lane.b32.xlu0 %v216, 72
  %v1690 = vpop.permute.xlu0 %1689
  %v1691 = vsel %vm239, %v1688, 0
  %v1693 = vsel %vm239, %v1690, 0
  %1695 = vmatprep.subr.mxu0 0.0
  %1696 = vmatpush1.xpose.msra.mxu0 0.0
  %1697 = vmatprep.subr.mxu0 0.0
  %1698 = vmatpush1.xpose.msra.mxu0 0.0
  %1699 = vmatprep.subr.mxu0 0.0
  %1700 = vmatpush1.xpose.msra.mxu0 0.0
  %1701 = vmatprep.subr.mxu0 0.0
  %1702 = vmatpush1.xpose.msra.mxu0 0.0
  %1703 = vmatprep.subr.mxu0 0.0
  %1704 = vmatpush1.xpose.msra.mxu0 0.0
  %1705 = vmatprep.subr.mxu0 0.0
  %1706 = vmatpush1.xpose.msra.mxu0 0.0
  %1707 = vmatprep.subr.mxu0 0.0
  %1708 = vmatpush1.xpose.msra.mxu0 0.0
  %1709 = vmatprep.subr.mxu0 0.0
  %1710 = vmatpush1.xpose.msra.mxu0 0.0
  %1711 = vmatprep.subr.mxu0 0.0
  %1712 = vmatpush1.xpose.msra.mxu0 0.0
  %1713 = vmatprep.subr.mxu0 0.0
  %1714 = vmatpush1.xpose.msra.mxu0 0.0
  %1715 = vmatprep.subr.mxu0 0.0
  %1716 = vmatpush1.xpose.msra.mxu0 0.0
  %1717 = vmatprep.subr.mxu0 0.0
  %1718 = vmatpush1.xpose.msra.mxu0 0.0
  %1719 = vmatprep.subr.mxu0 0.0
  %1720 = vmatpush1.xpose.msra.mxu0 0.0
  %1721 = vmatprep.subr.mxu0 0.0
  %1722 = vmatpush1.xpose.msra.mxu0 0.0
  %1723 = vmatprep.subr.mxu0 0.0
  %1724 = vmatpush1.xpose.msra.mxu0 0.0
  %1725 = vmatprep.subr.mxu0 0.0
  %1726 = vmatpush1.xpose.msra.mxu0 %v1693
  %1727 = vmatprep.subr.mxu0 0.0
  %1728 = vmatpush2.xpose.msra.mxu0 0.0
  %1729 = vmatprep.subr.mxu0 0.0
  %1730 = vmatpush2.xpose.msra.mxu0 0.0
  %1731 = vmatprep.subr.mxu0 0.0
  %1732 = vmatpush2.xpose.msra.mxu0 0.0
  %1733 = vmatprep.subr.mxu0 0.0
  %1734 = vmatpush2.xpose.msra.mxu0 0.0
  %1735 = vmatprep.subr.mxu0 0.0
  %1736 = vmatpush2.xpose.msra.mxu0 0.0
  %1737 = vmatprep.subr.mxu0 0.0
  %1738 = vmatpush2.xpose.msra.mxu0 0.0
  %1739 = vmatprep.subr.mxu0 0.0
  %1740 = vmatpush2.xpose.msra.mxu0 0.0
  %1741 = vmatprep.subr.mxu0 0.0
  %1742 = vmatpush2.xpose.msra.mxu0 0.0
  %1743 = vmatprep.subr.mxu0 0.0
  %1744 = vmatpush2.xpose.msra.mxu0 0.0
  %1745 = vmatprep.subr.mxu0 0.0
  %1746 = vmatpush2.xpose.msra.mxu0 0.0
  %1747 = vmatprep.subr.mxu0 0.0
  %1748 = vmatpush2.xpose.msra.mxu0 0.0
  %1749 = vmatprep.subr.mxu0 0.0
  %1750 = vmatpush2.xpose.msra.mxu0 0.0
  %1751 = vmatprep.subr.mxu0 0.0
  %1752 = vmatpush2.xpose.msra.mxu0 0.0
  %1753 = vmatprep.subr.mxu0 0.0
  %1754 = vmatpush2.xpose.msra.mxu0 0.0
  %1755 = vmatprep.subr.mxu0 0.0
  %1756 = vmatpush2.xpose.msra.mxu0 0.0
  %1757 = vmatprep.subr.mxu0 0.0
  %1758 = vmatpush2.xpose.msra.mxu0 0.0
  %1759 = vmatprep.mubr.f32.mxu0 0.0
  %1760 = vmatmul.mubr.f32.gmra.mxu0 %v1691
  %v1761 = vpop.f32.mrf.mxu0
  %v1762 = vadd.f32 0.0, %v1761
  %v1763 = vpop.f32.mrf.mxu0
  %1764 = vdwg.mxu0
  %v1765 = vadd.f32 %v1216, %v1133
  %v1766 = vadd.f32 %v1294, %v1134
  %v1767 = vadd.f32 %v1372, %v1135
  %v1768 = vadd.f32 %v1450, %v1136
  %v1769 = vadd.f32 %v1528, %v1137
  %v1770 = vadd.f32 %v1606, %v1138
  %v1771 = vadd.f32 %v1684, %v1139
  %v1772 = vadd.f32 %v1762, %v1140
  %v1773 = vmul.f32 %v1765, 0.35355338
  %v1774 = vmul.f32 %v1766, 0.35355338
  %v1775 = vmul.f32 %v1767, 0.35355338
  %v1776 = vmul.f32 %v1768, 0.35355338
  %v1777 = vmul.f32 %v1769, 0.35355338
  %v1778 = vmul.f32 %v1770, 0.35355338
  %v1779 = vmul.f32 %v1771, 0.35355338
  %v1780 = vmul.f32 %v1772, 0.35355338
  %v1781 = vsel %vm239, %v1773, -inf
  %1782 = vmax.xlane.f32.xlu0 %v1781
  %v1783 = vpop.xlane.xlu0 %1782
  %v1784 = vsel %vm239, %v1774, -inf
  %1785 = vmax.xlane.f32.xlu0 %v1784
  %v1786 = vpop.xlane.xlu0 %1785
  %v1787 = vsel %vm239, %v1775, -inf
  %1788 = vmax.xlane.f32.xlu0 %v1787
  %v1789 = vpop.xlane.xlu0 %1788
  %v1790 = vsel %vm239, %v1776, -inf
  %1791 = vmax.xlane.f32.xlu0 %v1790
  %v1792 = vpop.xlane.xlu0 %1791
  %v1793 = vsel %vm239, %v1777, -inf
  %1794 = vmax.xlane.f32.xlu0 %v1793
  %v1795 = vpop.xlane.xlu0 %1794
  %v1796 = vsel %vm239, %v1778, -inf
  %1797 = vmax.xlane.f32.xlu0 %v1796
  %v1798 = vpop.xlane.xlu0 %1797
  %v1799 = vsel %vm239, %v1779, -inf
  %1800 = vmax.xlane.f32.xlu0 %v1799
  %v1801 = vpop.xlane.xlu0 %1800
  %v1802 = vsel %vm239, %v1780, -inf
  %1803 = vmax.xlane.f32.xlu0 %v1802
  %v1804 = vpop.xlane.xlu0 %1803
  %v1805 = vsub.f32 %v1773, %v1783
  %v1806 = vsub.f32 %v1774, %v1786
  %v1807 = vsub.f32 %v1775, %v1789
  %v1808 = vsub.f32 %v1776, %v1792
  %v1809 = vsub.f32 %v1777, %v1795
  %v1810 = vsub.f32 %v1778, %v1798
  %v1811 = vsub.f32 %v1779, %v1801
  %v1812 = vsub.f32 %v1780, %v1804
  %v1813 = vmul.f32 %v1805, 1.442695
  %v1814 = vpow.pop %v1813
  %v1815 = vmul.f32 %v1806, 1.442695
  %v1816 = vpow.pop %v1815
  %v1817 = vmul.f32 %v1807, 1.442695
  %v1818 = vpow.pop %v1817
  %v1819 = vmul.f32 %v1808, 1.442695
  %v1820 = vpow.pop %v1819
  %v1821 = vmul.f32 %v1809, 1.442695
  %v1822 = vpow.pop %v1821
  %v1823 = vmul.f32 %v1810, 1.442695
  %v1824 = vpow.pop %v1823
  %v1825 = vmul.f32 %v1811, 1.442695
  %v1826 = vpow.pop %v1825
  %v1827 = vmul.f32 %v1812, 1.442695
  %v1828 = vpow.pop %v1827
  %v1829 = vsel %vm239, %v1814, 0.0
  %1830 = vadd.xlane.f32.xlu0 %v1829
  %v1831 = vpop.xlane.xlu0 %1830
  %v1832 = vsel %vm239, %v1816, 0.0
  %1833 = vadd.xlane.f32.xlu0 %v1832
  %v1834 = vpop.xlane.xlu0 %1833
  %v1835 = vsel %vm239, %v1818, 0.0
  %1836 = vadd.xlane.f32.xlu0 %v1835
  %v1837 = vpop.xlane.xlu0 %1836
  %v1838 = vsel %vm239, %v1820, 0.0
  %1839 = vadd.xlane.f32.xlu0 %v1838
  %v1840 = vpop.xlane.xlu0 %1839
  %v1841 = vsel %vm239, %v1822, 0.0
  %1842 = vadd.xlane.f32.xlu0 %v1841
  %v1843 = vpop.xlane.xlu0 %1842
  %v1844 = vsel %vm239, %v1824, 0.0
  %1845 = vadd.xlane.f32.xlu0 %v1844
  %v1846 = vpop.xlane.xlu0 %1845
  %v1847 = vsel %vm239, %v1826, 0.0
  %1848 = vadd.xlane.f32.xlu0 %v1847
  %v1849 = vpop.xlane.xlu0 %1848
  %v1850 = vsel %vm239, %v1828, 0.0
  %1851 = vadd.xlane.f32.xlu0 %v1850
  %v1852 = vpop.xlane.xlu0 %1851
  %v1853 = vrcp.pop %v1831
  %v1854 = vmul.f32 %v1814, %v1853
  %v1855 = vrcp.pop %v1834
  %v1856 = vmul.f32 %v1816, %v1855
  %v1857 = vrcp.pop %v1837
  %v1858 = vmul.f32 %v1818, %v1857
  %v1859 = vrcp.pop %v1840
  %v1860 = vmul.f32 %v1820, %v1859
  %v1861 = vrcp.pop %v1843
  %v1862 = vmul.f32 %v1822, %v1861
  %v1863 = vrcp.pop %v1846
  %v1864 = vmul.f32 %v1824, %v1863
  %v1865 = vrcp.pop %v1849
  %v1866 = vmul.f32 %v1826, %v1865
  %v1867 = vrcp.pop %v1852
  %v1868 = vmul.f32 %v1828, %v1867
  %1869 = vrot.lane.b32.xlu0 %v211, 64
  %v1870 = vpop.permute.xlu0 %1869
  %v1873 = vsel %vm239, %v1854, 0
  %1875 = vmatprep.subr.mxu0 0.0
  %1876 = vmatpush1.msra.mxu0 0.0
  %1877 = vmatprep.subr.mxu0 0.0
  %1878 = vmatpush1.msra.mxu0 0.0
  %1879 = vmatprep.subr.mxu0 0.0
  %1880 = vmatpush1.msra.mxu0 0.0
  %1881 = vmatprep.subr.mxu0 0.0
  %1882 = vmatpush1.msra.mxu0 0.0
  %1883 = vmatprep.subr.mxu0 0.0
  %1884 = vmatpush1.msra.mxu0 0.0
  %1885 = vmatprep.subr.mxu0 0.0
  %1886 = vmatpush1.msra.mxu0 0.0
  %1887 = vmatprep.subr.mxu0 0.0
  %1888 = vmatpush1.msra.mxu0 0.0
  %1889 = vmatprep.subr.mxu0 0.0
  %1890 = vmatpush1.msra.mxu0 0.0
  %1891 = vmatprep.subr.mxu0 0.0
  %1892 = vmatpush1.msra.mxu0 0.0
  %1893 = vmatprep.subr.mxu0 0.0
  %1894 = vmatpush1.msra.mxu0 0.0
  %1895 = vmatprep.subr.mxu0 0.0
  %1896 = vmatpush1.msra.mxu0 0.0
  %1897 = vmatprep.subr.mxu0 0.0
  %1898 = vmatpush1.msra.mxu0 0.0
  %1899 = vmatprep.subr.mxu0 0.0
  %1900 = vmatpush1.msra.mxu0 0.0
  %1901 = vmatprep.subr.mxu0 0.0
  %1902 = vmatpush1.msra.mxu0 0.0
  %1903 = vmatprep.subr.mxu0 0.0
  %1904 = vmatpush1.msra.mxu0 0.0
  %1905 = vmatprep.subr.mxu0 0.0
  %1906 = vmatpush1.msra.mxu0 %v1870
  %1907 = vmatprep.subr.mxu0 0.0
  %1908 = vmatpush2.msra.mxu0 0.0
  %1909 = vmatprep.subr.mxu0 0.0
  %1910 = vmatpush2.msra.mxu0 0.0
  %1911 = vmatprep.subr.mxu0 0.0
  %1912 = vmatpush2.msra.mxu0 0.0
  %1913 = vmatprep.subr.mxu0 0.0
  %1914 = vmatpush2.msra.mxu0 0.0
  %1915 = vmatprep.subr.mxu0 0.0
  %1916 = vmatpush2.msra.mxu0 0.0
  %1917 = vmatprep.subr.mxu0 0.0
  %1918 = vmatpush2.msra.mxu0 0.0
  %1919 = vmatprep.subr.mxu0 0.0
  %1920 = vmatpush2.msra.mxu0 0.0
  %1921 = vmatprep.subr.mxu0 0.0
  %1922 = vmatpush2.msra.mxu0 0.0
  %1923 = vmatprep.subr.mxu0 0.0
  %1924 = vmatpush2.msra.mxu0 0.0
  %1925 = vmatprep.subr.mxu0 0.0
  %1926 = vmatpush2.msra.mxu0 0.0
  %1927 = vmatprep.subr.mxu0 0.0
  %1928 = vmatpush2.msra.mxu0 0.0
  %1929 = vmatprep.subr.mxu0 0.0
  %1930 = vmatpush2.msra.mxu0 0.0
  %1931 = vmatprep.subr.mxu0 0.0
  %1932 = vmatpush2.msra.mxu0 0.0
  %1933 = vmatprep.subr.mxu0 0.0
  %1934 = vmatpush2.msra.mxu0 0.0
  %1935 = vmatprep.subr.mxu0 0.0
  %1936 = vmatpush2.msra.mxu0 0.0
  %1937 = vmatprep.subr.mxu0 0.0
  %1938 = vmatpush2.msra.mxu0 0.0
  %1939 = vmatprep.mubr.f32.mxu0 0.0
  %1940 = vmatmul.mubr.f32.gmra.mxu0 %v1873
  %v1941 = vpop.f32.mrf.mxu0
  %v1942 = vadd.f32 0.0, %v1941
  %v1943 = vpop.f32.mrf.mxu0
  %1944 = vdwg.mxu0
  %1945 = vrot.lane.b32.xlu0 %v211, 56
  %v1946 = vpop.permute.xlu0 %1945
  %v1949 = vsel %vm239, %v1858, 0
  %1951 = vmatprep.subr.mxu0 0.0
  %1952 = vmatpush1.msra.mxu0 0.0
  %1953 = vmatprep.subr.mxu0 0.0
  %1954 = vmatpush1.msra.mxu0 0.0
  %1955 = vmatprep.subr.mxu0 0.0
  %1956 = vmatpush1.msra.mxu0 0.0
  %1957 = vmatprep.subr.mxu0 0.0
  %1958 = vmatpush1.msra.mxu0 0.0
  %1959 = vmatprep.subr.mxu0 0.0
  %1960 = vmatpush1.msra.mxu0 0.0
  %1961 = vmatprep.subr.mxu0 0.0
  %1962 = vmatpush1.msra.mxu0 0.0
  %1963 = vmatprep.subr.mxu0 0.0
  %1964 = vmatpush1.msra.mxu0 0.0
  %1965 = vmatprep.subr.mxu0 0.0
  %1966 = vmatpush1.msra.mxu0 0.0
  %1967 = vmatprep.subr.mxu0 0.0
  %1968 = vmatpush1.msra.mxu0 0.0
  %1969 = vmatprep.subr.mxu0 0.0
  %1970 = vmatpush1.msra.mxu0 0.0
  %1971 = vmatprep.subr.mxu0 0.0
  %1972 = vmatpush1.msra.mxu0 0.0
  %1973 = vmatprep.subr.mxu0 0.0
  %1974 = vmatpush1.msra.mxu0 0.0
  %1975 = vmatprep.subr.mxu0 0.0
  %1976 = vmatpush1.msra.mxu0 0.0
  %1977 = vmatprep.subr.mxu0 0.0
  %1978 = vmatpush1.msra.mxu0 0.0
  %1979 = vmatprep.subr.mxu0 0.0
  %1980 = vmatpush1.msra.mxu0 0.0
  %1981 = vmatprep.subr.mxu0 0.0
  %1982 = vmatpush1.msra.mxu0 %v1946
  %1983 = vmatprep.subr.mxu0 0.0
  %1984 = vmatpush2.msra.mxu0 0.0
  %1985 = vmatprep.subr.mxu0 0.0
  %1986 = vmatpush2.msra.mxu0 0.0
  %1987 = vmatprep.subr.mxu0 0.0
  %1988 = vmatpush2.msra.mxu0 0.0
  %1989 = vmatprep.subr.mxu0 0.0
  %1990 = vmatpush2.msra.mxu0 0.0
  %1991 = vmatprep.subr.mxu0 0.0
  %1992 = vmatpush2.msra.mxu0 0.0
  %1993 = vmatprep.subr.mxu0 0.0
  %1994 = vmatpush2.msra.mxu0 0.0
  %1995 = vmatprep.subr.mxu0 0.0
  %1996 = vmatpush2.msra.mxu0 0.0
  %1997 = vmatprep.subr.mxu0 0.0
  %1998 = vmatpush2.msra.mxu0 0.0
  %1999 = vmatprep.subr.mxu0 0.0
  %2000 = vmatpush2.msra.mxu0 0.0
  %2001 = vmatprep.subr.mxu0 0.0
  %2002 = vmatpush2.msra.mxu0 0.0
  %2003 = vmatprep.subr.mxu0 0.0
  %2004 = vmatpush2.msra.mxu0 0.0
  %2005 = vmatprep.subr.mxu0 0.0
  %2006 = vmatpush2.msra.mxu0 0.0
  %2007 = vmatprep.subr.mxu0 0.0
  %2008 = vmatpush2.msra.mxu0 0.0
  %2009 = vmatprep.subr.mxu0 0.0
  %2010 = vmatpush2.msra.mxu0 0.0
  %2011 = vmatprep.subr.mxu0 0.0
  %2012 = vmatpush2.msra.mxu0 0.0
  %2013 = vmatprep.subr.mxu0 0.0
  %2014 = vmatpush2.msra.mxu0 0.0
  %2015 = vmatprep.mubr.f32.mxu0 0.0
  %2016 = vmatmul.mubr.f32.gmra.mxu0 %v1949
  %v2017 = vpop.f32.mrf.mxu0
  %v2018 = vadd.f32 0.0, %v2017
  %v2019 = vpop.f32.mrf.mxu0
  %2020 = vdwg.mxu0
  %2021 = vrot.lane.b32.xlu0 %v211, 48
  %v2022 = vpop.permute.xlu0 %2021
  %v2025 = vsel %vm239, %v1862, 0
  %2027 = vmatprep.subr.mxu0 0.0
  %2028 = vmatpush1.msra.mxu0 0.0
  %2029 = vmatprep.subr.mxu0 0.0
  %2030 = vmatpush1.msra.mxu0 0.0
  %2031 = vmatprep.subr.mxu0 0.0
  %2032 = vmatpush1.msra.mxu0 0.0
  %2033 = vmatprep.subr.mxu0 0.0
  %2034 = vmatpush1.msra.mxu0 0.0
  %2035 = vmatprep.subr.mxu0 0.0
  %2036 = vmatpush1.msra.mxu0 0.0
  %2037 = vmatprep.subr.mxu0 0.0
  %2038 = vmatpush1.msra.mxu0 0.0
  %2039 = vmatprep.subr.mxu0 0.0
  %2040 = vmatpush1.msra.mxu0 0.0
  %2041 = vmatprep.subr.mxu0 0.0
  %2042 = vmatpush1.msra.mxu0 0.0
  %2043 = vmatprep.subr.mxu0 0.0
  %2044 = vmatpush1.msra.mxu0 0.0
  %2045 = vmatprep.subr.mxu0 0.0
  %2046 = vmatpush1.msra.mxu0 0.0
  %2047 = vmatprep.subr.mxu0 0.0
  %2048 = vmatpush1.msra.mxu0 0.0
  %2049 = vmatprep.subr.mxu0 0.0
  %2050 = vmatpush1.msra.mxu0 0.0
  %2051 = vmatprep.subr.mxu0 0.0
  %2052 = vmatpush1.msra.mxu0 0.0
  %2053 = vmatprep.subr.mxu0 0.0
  %2054 = vmatpush1.msra.mxu0 0.0
  %2055 = vmatprep.subr.mxu0 0.0
  %2056 = vmatpush1.msra.mxu0 0.0
  %2057 = vmatprep.subr.mxu0 0.0
  %2058 = vmatpush1.msra.mxu0 %v2022
  %2059 = vmatprep.subr.mxu0 0.0
  %2060 = vmatpush2.msra.mxu0 0.0
  %2061 = vmatprep.subr.mxu0 0.0
  %2062 = vmatpush2.msra.mxu0 0.0
  %2063 = vmatprep.subr.mxu0 0.0
  %2064 = vmatpush2.msra.mxu0 0.0
  %2065 = vmatprep.subr.mxu0 0.0
  %2066 = vmatpush2.msra.mxu0 0.0
  %2067 = vmatprep.subr.mxu0 0.0
  %2068 = vmatpush2.msra.mxu0 0.0
  %2069 = vmatprep.subr.mxu0 0.0
  %2070 = vmatpush2.msra.mxu0 0.0
  %2071 = vmatprep.subr.mxu0 0.0
  %2072 = vmatpush2.msra.mxu0 0.0
  %2073 = vmatprep.subr.mxu0 0.0
  %2074 = vmatpush2.msra.mxu0 0.0
  %2075 = vmatprep.subr.mxu0 0.0
  %2076 = vmatpush2.msra.mxu0 0.0
  %2077 = vmatprep.subr.mxu0 0.0
  %2078 = vmatpush2.msra.mxu0 0.0
  %2079 = vmatprep.subr.mxu0 0.0
  %2080 = vmatpush2.msra.mxu0 0.0
  %2081 = vmatprep.subr.mxu0 0.0
  %2082 = vmatpush2.msra.mxu0 0.0
  %2083 = vmatprep.subr.mxu0 0.0
  %2084 = vmatpush2.msra.mxu0 0.0
  %2085 = vmatprep.subr.mxu0 0.0
  %2086 = vmatpush2.msra.mxu0 0.0
  %2087 = vmatprep.subr.mxu0 0.0
  %2088 = vmatpush2.msra.mxu0 0.0
  %2089 = vmatprep.subr.mxu0 0.0
  %2090 = vmatpush2.msra.mxu0 0.0
  %2091 = vmatprep.mubr.f32.mxu0 0.0
  %2092 = vmatmul.mubr.f32.gmra.mxu0 %v2025
  %v2093 = vpop.f32.mrf.mxu0
  %v2094 = vadd.f32 0.0, %v2093
  %v2095 = vpop.f32.mrf.mxu0
  %2096 = vdwg.mxu0
  %2097 = vrot.lane.b32.xlu0 %v211, 40
  %v2098 = vpop.permute.xlu0 %2097
  %v2101 = vsel %vm239, %v1866, 0
  %2103 = vmatprep.subr.mxu0 0.0
  %2104 = vmatpush1.msra.mxu0 0.0
  %2105 = vmatprep.subr.mxu0 0.0
  %2106 = vmatpush1.msra.mxu0 0.0
  %2107 = vmatprep.subr.mxu0 0.0
  %2108 = vmatpush1.msra.mxu0 0.0
  %2109 = vmatprep.subr.mxu0 0.0
  %2110 = vmatpush1.msra.mxu0 0.0
  %2111 = vmatprep.subr.mxu0 0.0
  %2112 = vmatpush1.msra.mxu0 0.0
  %2113 = vmatprep.subr.mxu0 0.0
  %2114 = vmatpush1.msra.mxu0 0.0
  %2115 = vmatprep.subr.mxu0 0.0
  %2116 = vmatpush1.msra.mxu0 0.0
  %2117 = vmatprep.subr.mxu0 0.0
  %2118 = vmatpush1.msra.mxu0 0.0
  %2119 = vmatprep.subr.mxu0 0.0
  %2120 = vmatpush1.msra.mxu0 0.0
  %2121 = vmatprep.subr.mxu0 0.0
  %2122 = vmatpush1.msra.mxu0 0.0
  %2123 = vmatprep.subr.mxu0 0.0
  %2124 = vmatpush1.msra.mxu0 0.0
  %2125 = vmatprep.subr.mxu0 0.0
  %2126 = vmatpush1.msra.mxu0 0.0
  %2127 = vmatprep.subr.mxu0 0.0
  %2128 = vmatpush1.msra.mxu0 0.0
  %2129 = vmatprep.subr.mxu0 0.0
  %2130 = vmatpush1.msra.mxu0 0.0
  %2131 = vmatprep.subr.mxu0 0.0
  %2132 = vmatpush1.msra.mxu0 0.0
  %2133 = vmatprep.subr.mxu0 0.0
  %2134 = vmatpush1.msra.mxu0 %v2098
  %2135 = vmatprep.subr.mxu0 0.0
  %2136 = vmatpush2.msra.mxu0 0.0
  %2137 = vmatprep.subr.mxu0 0.0
  %2138 = vmatpush2.msra.mxu0 0.0
  %2139 = vmatprep.subr.mxu0 0.0
  %2140 = vmatpush2.msra.mxu0 0.0
  %2141 = vmatprep.subr.mxu0 0.0
  %2142 = vmatpush2.msra.mxu0 0.0
  %2143 = vmatprep.subr.mxu0 0.0
  %2144 = vmatpush2.msra.mxu0 0.0
  %2145 = vmatprep.subr.mxu0 0.0
  %2146 = vmatpush2.msra.mxu0 0.0
  %2147 = vmatprep.subr.mxu0 0.0
  %2148 = vmatpush2.msra.mxu0 0.0
  %2149 = vmatprep.subr.mxu0 0.0
  %2150 = vmatpush2.msra.mxu0 0.0
  %2151 = vmatprep.subr.mxu0 0.0
  %2152 = vmatpush2.msra.mxu0 0.0
  %2153 = vmatprep.subr.mxu0 0.0
  %2154 = vmatpush2.msra.mxu0 0.0
  %2155 = vmatprep.subr.mxu0 0.0
  %2156 = vmatpush2.msra.mxu0 0.0
  %2157 = vmatprep.subr.mxu0 0.0
  %2158 = vmatpush2.msra.mxu0 0.0
  %2159 = vmatprep.subr.mxu0 0.0
  %2160 = vmatpush2.msra.mxu0 0.0
  %2161 = vmatprep.subr.mxu0 0.0
  %2162 = vmatpush2.msra.mxu0 0.0
  %2163 = vmatprep.subr.mxu0 0.0
  %2164 = vmatpush2.msra.mxu0 0.0
  %2165 = vmatprep.subr.mxu0 0.0
  %2166 = vmatpush2.msra.mxu0 0.0
  %2167 = vmatprep.mubr.f32.mxu0 0.0
  %2168 = vmatmul.mubr.f32.gmra.mxu0 %v2101
  %v2169 = vpop.f32.mrf.mxu0
  %v2170 = vadd.f32 0.0, %v2169
  %v2171 = vpop.f32.mrf.mxu0
  %2172 = vdwg.mxu0
  %2174 = vrot.lane.b32.xlu0 %v2018, 8
  %v2175 = vpop.permute.xlu0 %2174
  %2178 = vrot.lane.b32.xlu0 %v2094, 16
  %v2179 = vpop.permute.xlu0 %2178
  %2182 = vrot.lane.b32.xlu0 %v2170, 24
  %v2183 = vpop.permute.xlu0 %2182
  %v2185 = vsel %vm239, %v1942, %v2175
  %vm2186 = vcmask 130048
  %v2187 = vsel %vm2186, %v2185, %v2179
  %vm2188 = vcmask 195584
  %v2189 = vsel %vm2188, %v2187, %v2183
  %2190 = vrot.lane.b32.xlu0 %v216, 64
  %v2191 = vpop.permute.xlu0 %2190
  %v2194 = vsel %vm239, %v1856, 0
  %2196 = vmatprep.subr.mxu0 0.0
  %2197 = vmatpush1.msra.mxu0 0.0
  %2198 = vmatprep.subr.mxu0 0.0
  %2199 = vmatpush1.msra.mxu0 0.0
  %2200 = vmatprep.subr.mxu0 0.0
  %2201 = vmatpush1.msra.mxu0 0.0
  %2202 = vmatprep.subr.mxu0 0.0
  %2203 = vmatpush1.msra.mxu0 0.0
  %2204 = vmatprep.subr.mxu0 0.0
  %2205 = vmatpush1.msra.mxu0 0.0
  %2206 = vmatprep.subr.mxu0 0.0
  %2207 = vmatpush1.msra.mxu0 0.0
  %2208 = vmatprep.subr.mxu0 0.0
  %2209 = vmatpush1.msra.mxu0 0.0
  %2210 = vmatprep.subr.mxu0 0.0
  %2211 = vmatpush1.msra.mxu0 0.0
  %2212 = vmatprep.subr.mxu0 0.0
  %2213 = vmatpush1.msra.mxu0 0.0
  %2214 = vmatprep.subr.mxu0 0.0
  %2215 = vmatpush1.msra.mxu0 0.0
  %2216 = vmatprep.subr.mxu0 0.0
  %2217 = vmatpush1.msra.mxu0 0.0
  %2218 = vmatprep.subr.mxu0 0.0
  %2219 = vmatpush1.msra.mxu0 0.0
  %2220 = vmatprep.subr.mxu0 0.0
  %2221 = vmatpush1.msra.mxu0 0.0
  %2222 = vmatprep.subr.mxu0 0.0
  %2223 = vmatpush1.msra.mxu0 0.0
  %2224 = vmatprep.subr.mxu0 0.0
  %2225 = vmatpush1.msra.mxu0 0.0
  %2226 = vmatprep.subr.mxu0 0.0
  %2227 = vmatpush1.msra.mxu0 %v2191
  %2228 = vmatprep.subr.mxu0 0.0
  %2229 = vmatpush2.msra.mxu0 0.0
  %2230 = vmatprep.subr.mxu0 0.0
  %2231 = vmatpush2.msra.mxu0 0.0
  %2232 = vmatprep.subr.mxu0 0.0
  %2233 = vmatpush2.msra.mxu0 0.0
  %2234 = vmatprep.subr.mxu0 0.0
  %2235 = vmatpush2.msra.mxu0 0.0
  %2236 = vmatprep.subr.mxu0 0.0
  %2237 = vmatpush2.msra.mxu0 0.0
  %2238 = vmatprep.subr.mxu0 0.0
  %2239 = vmatpush2.msra.mxu0 0.0
  %2240 = vmatprep.subr.mxu0 0.0
  %2241 = vmatpush2.msra.mxu0 0.0
  %2242 = vmatprep.subr.mxu0 0.0
  %2243 = vmatpush2.msra.mxu0 0.0
  %2244 = vmatprep.subr.mxu0 0.0
  %2245 = vmatpush2.msra.mxu0 0.0
  %2246 = vmatprep.subr.mxu0 0.0
  %2247 = vmatpush2.msra.mxu0 0.0
  %2248 = vmatprep.subr.mxu0 0.0
  %2249 = vmatpush2.msra.mxu0 0.0
  %2250 = vmatprep.subr.mxu0 0.0
  %2251 = vmatpush2.msra.mxu0 0.0
  %2252 = vmatprep.subr.mxu0 0.0
  %2253 = vmatpush2.msra.mxu0 0.0
  %2254 = vmatprep.subr.mxu0 0.0
  %2255 = vmatpush2.msra.mxu0 0.0
  %2256 = vmatprep.subr.mxu0 0.0
  %2257 = vmatpush2.msra.mxu0 0.0
  %2258 = vmatprep.subr.mxu0 0.0
  %2259 = vmatpush2.msra.mxu0 0.0
  %2260 = vmatprep.mubr.f32.mxu0 0.0
  %2261 = vmatmul.mubr.f32.gmra.mxu0 %v2194
  %v2262 = vpop.f32.mrf.mxu0
  %v2263 = vadd.f32 0.0, %v2262
  %v2264 = vpop.f32.mrf.mxu0
  %2265 = vdwg.mxu0
  %2266 = vrot.lane.b32.xlu0 %v216, 56
  %v2267 = vpop.permute.xlu0 %2266
  %v2270 = vsel %vm239, %v1860, 0
  %2272 = vmatprep.subr.mxu0 0.0
  %2273 = vmatpush1.msra.mxu0 0.0
  %2274 = vmatprep.subr.mxu0 0.0
  %2275 = vmatpush1.msra.mxu0 0.0
  %2276 = vmatprep.subr.mxu0 0.0
  %2277 = vmatpush1.msra.mxu0 0.0
  %2278 = vmatprep.subr.mxu0 0.0
  %2279 = vmatpush1.msra.mxu0 0.0
  %2280 = vmatprep.subr.mxu0 0.0
  %2281 = vmatpush1.msra.mxu0 0.0
  %2282 = vmatprep.subr.mxu0 0.0
  %2283 = vmatpush1.msra.mxu0 0.0
  %2284 = vmatprep.subr.mxu0 0.0
  %2285 = vmatpush1.msra.mxu0 0.0
  %2286 = vmatprep.subr.mxu0 0.0
  %2287 = vmatpush1.msra.mxu0 0.0
  %2288 = vmatprep.subr.mxu0 0.0
  %2289 = vmatpush1.msra.mxu0 0.0
  %2290 = vmatprep.subr.mxu0 0.0
  %2291 = vmatpush1.msra.mxu0 0.0
  %2292 = vmatprep.subr.mxu0 0.0
  %2293 = vmatpush1.msra.mxu0 0.0
  %2294 = vmatprep.subr.mxu0 0.0
  %2295 = vmatpush1.msra.mxu0 0.0
  %2296 = vmatprep.subr.mxu0 0.0
  %2297 = vmatpush1.msra.mxu0 0.0
  %2298 = vmatprep.subr.mxu0 0.0
  %2299 = vmatpush1.msra.mxu0 0.0
  %2300 = vmatprep.subr.mxu0 0.0
  %2301 = vmatpush1.msra.mxu0 0.0
  %2302 = vmatprep.subr.mxu0 0.0
  %2303 = vmatpush1.msra.mxu0 %v2267
  %2304 = vmatprep.subr.mxu0 0.0
  %2305 = vmatpush2.msra.mxu0 0.0
  %2306 = vmatprep.subr.mxu0 0.0
  %2307 = vmatpush2.msra.mxu0 0.0
  %2308 = vmatprep.subr.mxu0 0.0
  %2309 = vmatpush2.msra.mxu0 0.0
  %2310 = vmatprep.subr.mxu0 0.0
  %2311 = vmatpush2.msra.mxu0 0.0
  %2312 = vmatprep.subr.mxu0 0.0
  %2313 = vmatpush2.msra.mxu0 0.0
  %2314 = vmatprep.subr.mxu0 0.0
  %2315 = vmatpush2.msra.mxu0 0.0
  %2316 = vmatprep.subr.mxu0 0.0
  %2317 = vmatpush2.msra.mxu0 0.0
  %2318 = vmatprep.subr.mxu0 0.0
  %2319 = vmatpush2.msra.mxu0 0.0
  %2320 = vmatprep.subr.mxu0 0.0
  %2321 = vmatpush2.msra.mxu0 0.0
  %2322 = vmatprep.subr.mxu0 0.0
  %2323 = vmatpush2.msra.mxu0 0.0
  %2324 = vmatprep.subr.mxu0 0.0
  %2325 = vmatpush2.msra.mxu0 0.0
  %2326 = vmatprep.subr.mxu0 0.0
  %2327 = vmatpush2.msra.mxu0 0.0
  %2328 = vmatprep.subr.mxu0 0.0
  %2329 = vmatpush2.msra.mxu0 0.0
  %2330 = vmatprep.subr.mxu0 0.0
  %2331 = vmatpush2.msra.mxu0 0.0
  %2332 = vmatprep.subr.mxu0 0.0
  %2333 = vmatpush2.msra.mxu0 0.0
  %2334 = vmatprep.subr.mxu0 0.0
  %2335 = vmatpush2.msra.mxu0 0.0
  %2336 = vmatprep.mubr.f32.mxu0 0.0
  %2337 = vmatmul.mubr.f32.gmra.mxu0 %v2270
  %v2338 = vpop.f32.mrf.mxu0
  %v2339 = vadd.f32 0.0, %v2338
  %v2340 = vpop.f32.mrf.mxu0
  %2341 = vdwg.mxu0
  %2342 = vrot.lane.b32.xlu0 %v216, 48
  %v2343 = vpop.permute.xlu0 %2342
  %v2346 = vsel %vm239, %v1864, 0
  %2348 = vmatprep.subr.mxu0 0.0
  %2349 = vmatpush1.msra.mxu0 0.0
  %2350 = vmatprep.subr.mxu0 0.0
  %2351 = vmatpush1.msra.mxu0 0.0
  %2352 = vmatprep.subr.mxu0 0.0
  %2353 = vmatpush1.msra.mxu0 0.0
  %2354 = vmatprep.subr.mxu0 0.0
  %2355 = vmatpush1.msra.mxu0 0.0
  %2356 = vmatprep.subr.mxu0 0.0
  %2357 = vmatpush1.msra.mxu0 0.0
  %2358 = vmatprep.subr.mxu0 0.0
  %2359 = vmatpush1.msra.mxu0 0.0
  %2360 = vmatprep.subr.mxu0 0.0
  %2361 = vmatpush1.msra.mxu0 0.0
  %2362 = vmatprep.subr.mxu0 0.0
  %2363 = vmatpush1.msra.mxu0 0.0
  %2364 = vmatprep.subr.mxu0 0.0
  %2365 = vmatpush1.msra.mxu0 0.0
  %2366 = vmatprep.subr.mxu0 0.0
  %2367 = vmatpush1.msra.mxu0 0.0
  %2368 = vmatprep.subr.mxu0 0.0
  %2369 = vmatpush1.msra.mxu0 0.0
  %2370 = vmatprep.subr.mxu0 0.0
  %2371 = vmatpush1.msra.mxu0 0.0
  %2372 = vmatprep.subr.mxu0 0.0
  %2373 = vmatpush1.msra.mxu0 0.0
  %2374 = vmatprep.subr.mxu0 0.0
  %2375 = vmatpush1.msra.mxu0 0.0
  %2376 = vmatprep.subr.mxu0 0.0
  %2377 = vmatpush1.msra.mxu0 0.0
  %2378 = vmatprep.subr.mxu0 0.0
  %2379 = vmatpush1.msra.mxu0 %v2343
  %2380 = vmatprep.subr.mxu0 0.0
  %2381 = vmatpush2.msra.mxu0 0.0
  %2382 = vmatprep.subr.mxu0 0.0
  %2383 = vmatpush2.msra.mxu0 0.0
  %2384 = vmatprep.subr.mxu0 0.0
  %2385 = vmatpush2.msra.mxu0 0.0
  %2386 = vmatprep.subr.mxu0 0.0
  %2387 = vmatpush2.msra.mxu0 0.0
  %2388 = vmatprep.subr.mxu0 0.0
  %2389 = vmatpush2.msra.mxu0 0.0
  %2390 = vmatprep.subr.mxu0 0.0
  %2391 = vmatpush2.msra.mxu0 0.0
  %2392 = vmatprep.subr.mxu0 0.0
  %2393 = vmatpush2.msra.mxu0 0.0
  %2394 = vmatprep.subr.mxu0 0.0
  %2395 = vmatpush2.msra.mxu0 0.0
  %2396 = vmatprep.subr.mxu0 0.0
  %2397 = vmatpush2.msra.mxu0 0.0
  %2398 = vmatprep.subr.mxu0 0.0
  %2399 = vmatpush2.msra.mxu0 0.0
  %2400 = vmatprep.subr.mxu0 0.0
  %2401 = vmatpush2.msra.mxu0 0.0
  %2402 = vmatprep.subr.mxu0 0.0
  %2403 = vmatpush2.msra.mxu0 0.0
  %2404 = vmatprep.subr.mxu0 0.0
  %2405 = vmatpush2.msra.mxu0 0.0
  %2406 = vmatprep.subr.mxu0 0.0
  %2407 = vmatpush2.msra.mxu0 0.0
  %2408 = vmatprep.subr.mxu0 0.0
  %2409 = vmatpush2.msra.mxu0 0.0
  %2410 = vmatprep.subr.mxu0 0.0
  %2411 = vmatpush2.msra.mxu0 0.0
  %2412 = vmatprep.mubr.f32.mxu0 0.0
  %2413 = vmatmul.mubr.f32.gmra.mxu0 %v2346
  %v2414 = vpop.f32.mrf.mxu0
  %v2415 = vadd.f32 0.0, %v2414
  %v2416 = vpop.f32.mrf.mxu0
  %2417 = vdwg.mxu0
  %2418 = vrot.lane.b32.xlu0 %v216, 40
  %v2419 = vpop.permute.xlu0 %2418
  %v2422 = vsel %vm239, %v1868, 0
  %2424 = vmatprep.subr.mxu0 0.0
  %2425 = vmatpush1.msra.mxu0 0.0
  %2426 = vmatprep.subr.mxu0 0.0
  %2427 = vmatpush1.msra.mxu0 0.0
  %2428 = vmatprep.subr.mxu0 0.0
  %2429 = vmatpush1.msra.mxu0 0.0
  %2430 = vmatprep.subr.mxu0 0.0
  %2431 = vmatpush1.msra.mxu0 0.0
  %2432 = vmatprep.subr.mxu0 0.0
  %2433 = vmatpush1.msra.mxu0 0.0
  %2434 = vmatprep.subr.mxu0 0.0
  %2435 = vmatpush1.msra.mxu0 0.0
  %2436 = vmatprep.subr.mxu0 0.0
  %2437 = vmatpush1.msra.mxu0 0.0
  %2438 = vmatprep.subr.mxu0 0.0
  %2439 = vmatpush1.msra.mxu0 0.0
  %2440 = vmatprep.subr.mxu0 0.0
  %2441 = vmatpush1.msra.mxu0 0.0
  %2442 = vmatprep.subr.mxu0 0.0
  %2443 = vmatpush1.msra.mxu0 0.0
  %2444 = vmatprep.subr.mxu0 0.0
  %2445 = vmatpush1.msra.mxu0 0.0
  %2446 = vmatprep.subr.mxu0 0.0
  %2447 = vmatpush1.msra.mxu0 0.0
  %2448 = vmatprep.subr.mxu0 0.0
  %2449 = vmatpush1.msra.mxu0 0.0
  %2450 = vmatprep.subr.mxu0 0.0
  %2451 = vmatpush1.msra.mxu0 0.0
  %2452 = vmatprep.subr.mxu0 0.0
  %2453 = vmatpush1.msra.mxu0 0.0
  %2454 = vmatprep.subr.mxu0 0.0
  %2455 = vmatpush1.msra.mxu0 %v2419
  %2456 = vmatprep.subr.mxu0 0.0
  %2457 = vmatpush2.msra.mxu0 0.0
  %2458 = vmatprep.subr.mxu0 0.0
  %2459 = vmatpush2.msra.mxu0 0.0
  %2460 = vmatprep.subr.mxu0 0.0
  %2461 = vmatpush2.msra.mxu0 0.0
  %2462 = vmatprep.subr.mxu0 0.0
  %2463 = vmatpush2.msra.mxu0 0.0
  %2464 = vmatprep.subr.mxu0 0.0
  %2465 = vmatpush2.msra.mxu0 0.0
  %2466 = vmatprep.subr.mxu0 0.0
  %2467 = vmatpush2.msra.mxu0 0.0
  %2468 = vmatprep.subr.mxu0 0.0
  %2469 = vmatpush2.msra.mxu0 0.0
  %2470 = vmatprep.subr.mxu0 0.0
  %2471 = vmatpush2.msra.mxu0 0.0
  %2472 = vmatprep.subr.mxu0 0.0
  %2473 = vmatpush2.msra.mxu0 0.0
  %2474 = vmatprep.subr.mxu0 0.0
  %2475 = vmatpush2.msra.mxu0 0.0
  %2476 = vmatprep.subr.mxu0 0.0
  %2477 = vmatpush2.msra.mxu0 0.0
  %2478 = vmatprep.subr.mxu0 0.0
  %2479 = vmatpush2.msra.mxu0 0.0
  %2480 = vmatprep.subr.mxu0 0.0
  %2481 = vmatpush2.msra.mxu0 0.0
  %2482 = vmatprep.subr.mxu0 0.0
  %2483 = vmatpush2.msra.mxu0 0.0
  %2484 = vmatprep.subr.mxu0 0.0
  %2485 = vmatpush2.msra.mxu0 0.0
  %2486 = vmatprep.subr.mxu0 0.0
  %2487 = vmatpush2.msra.mxu0 0.0
  %2488 = vmatprep.mubr.f32.mxu0 0.0
  %2489 = vmatmul.mubr.f32.gmra.mxu0 %v2422
  %v2490 = vpop.f32.mrf.mxu0
  %v2491 = vadd.f32 0.0, %v2490
  %v2492 = vpop.f32.mrf.mxu0
  %2493 = vdwg.mxu0
  %2495 = vrot.lane.b32.xlu0 %v2339, 8
  %v2496 = vpop.permute.xlu0 %2495
  %2499 = vrot.lane.b32.xlu0 %v2415, 16
  %v2500 = vpop.permute.xlu0 %2499
  %2503 = vrot.lane.b32.xlu0 %v2491, 24
  %v2504 = vpop.permute.xlu0 %2503
  %v2506 = vsel %vm239, %v2263, %v2496
  %v2507 = vsel %vm2186, %v2506, %v2500
  %v2508 = vsel %vm2188, %v2507, %v2504
  %v2509 = vld [vmem:[%s3] sm:$0xff]
  %v2510 = vld [vmem:[%s3 + $0x8] sm:$0xff]
  %v2511 = vld [vmem:[%s3 + $0x10] sm:$0xff]
  %v2512 = vld [vmem:[%s3 + $0x18] sm:$0xff]
  %v2514 = vsel %vm136, %v2189, 0
  %v2517 = vsel %vm136, %v2508, 0
  %2519 = vmatprep.subr.mxu0 0.0
  %2520 = vmatpush1.msra.mxu0 0.0
  %2521 = vmatprep.subr.mxu0 0.0
  %2522 = vmatpush1.msra.mxu0 0.0
  %2523 = vmatprep.subr.mxu0 0.0
  %2524 = vmatpush1.msra.mxu0 0.0
  %2525 = vmatprep.subr.mxu0 0.0
  %2526 = vmatpush1.msra.mxu0 0.0
  %2527 = vmatprep.subr.mxu0 0.0
  %2528 = vmatpush1.msra.mxu0 0.0
  %2529 = vmatprep.subr.mxu0 0.0
  %2530 = vmatpush1.msra.mxu0 0.0
  %2531 = vmatprep.subr.mxu0 0.0
  %2532 = vmatpush1.msra.mxu0 0.0
  %2533 = vmatprep.subr.mxu0 0.0
  %2534 = vmatpush1.msra.mxu0 0.0
  %2535 = vmatprep.subr.mxu0 0.0
  %2536 = vmatpush1.msra.mxu0 0.0
  %2537 = vmatprep.subr.mxu0 0.0
  %2538 = vmatpush1.msra.mxu0 0.0
  %2539 = vmatprep.subr.mxu0 0.0
  %2540 = vmatpush1.msra.mxu0 0.0
  %2541 = vmatprep.subr.mxu0 0.0
  %2542 = vmatpush1.msra.mxu0 0.0
  %2543 = vmatprep.subr.mxu0 0.0
  %2544 = vmatpush1.msra.mxu0 %v2512
  %2545 = vmatprep.subr.mxu0 0.0
  %2546 = vmatpush1.msra.mxu0 %v2511
  %2547 = vmatprep.subr.mxu0 0.0
  %2548 = vmatpush1.msra.mxu0 %v2510
  %2549 = vmatprep.subr.mxu0 0.0
  %2550 = vmatpush1.msra.mxu0 %v2509
  %2551 = vmatprep.subr.mxu0 0.0
  %2552 = vmatpush2.msra.mxu0 0.0
  %2553 = vmatprep.subr.mxu0 0.0
  %2554 = vmatpush2.msra.mxu0 0.0
  %2555 = vmatprep.subr.mxu0 0.0
  %2556 = vmatpush2.msra.mxu0 0.0
  %2557 = vmatprep.subr.mxu0 0.0
  %2558 = vmatpush2.msra.mxu0 0.0
  %2559 = vmatprep.subr.mxu0 0.0
  %2560 = vmatpush2.msra.mxu0 0.0
  %2561 = vmatprep.subr.mxu0 0.0
  %2562 = vmatpush2.msra.mxu0 0.0
  %2563 = vmatprep.subr.mxu0 0.0
  %2564 = vmatpush2.msra.mxu0 0.0
  %2565 = vmatprep.subr.mxu0 0.0
  %2566 = vmatpush2.msra.mxu0 0.0
  %2567 = vmatprep.subr.mxu0 0.0
  %2568 = vmatpush2.msra.mxu0 0.0
  %2569 = vmatprep.subr.mxu0 0.0
  %2570 = vmatpush2.msra.mxu0 0.0
  %2571 = vmatprep.subr.mxu0 0.0
  %2572 = vmatpush2.msra.mxu0 0.0
  %2573 = vmatprep.subr.mxu0 0.0
  %2574 = vmatpush2.msra.mxu0 0.0
  %2575 = vmatprep.subr.mxu0 0.0
  %2576 = vmatpush2.msra.mxu0 0.0
  %2577 = vmatprep.subr.mxu0 0.0
  %2578 = vmatpush2.msra.mxu0 0.0
  %2579 = vmatprep.subr.mxu0 0.0
  %2580 = vmatpush2.msra.mxu0 0.0
  %2581 = vmatprep.subr.mxu0 0.0
  %2582 = vmatpush2.msra.mxu0 0.0
  %2583 = vmatprep.mubr.f32.mxu0 0.0
  %2584 = vmatmul.mubr.f32.gmra.mxu0 %v2514
  %v2585 = vpop.f32.mrf.mxu0
  %v2586 = vadd.f32 0.0, %v2585
  %v2587 = vpop.f32.mrf.mxu0
  %2588 = vmatprep.mubr.f32.mxu0 0.0
  %2589 = vmatmul.mubr.f32.gmra.mxu0 %v2517
  %v2590 = vpop.f32.mrf.mxu0
  %v2591 = vadd.f32 0.0, %v2590
  %v2592 = vpop.f32.mrf.mxu0
  %2593 = vdwg.mxu0
  %v2594 = vadd.f32 %v126, %v2586
  %v2595 = vadd.f32 %v130, %v2591
  %v2596 = vsel %vm136, %v2594, 0.0
  %2597 = vadd.xlane.f32.xlu0 %v2596
  %v2598 = vpop.xlane.xlu0 %2597
  %v2599 = vsel %vm136, %v2595, 0.0
  %2600 = vadd.xlane.f32.xlu0 %v2599
  %v2601 = vpop.xlane.xlu0 %2600
  %v2602 = vrcp.pop 32.0
  %v2603 = vmul.f32 %v2598, %v2602
  %v2604 = vmul.f32 %v2601, %v2602
  %v2605 = vsub.f32 %v2594, %v2603
  %v2606 = vsub.f32 %v2595, %v2604
  %v2607 = vmul.f32 %v2605, %v2605
  %v2608 = vmul.f32 %v2606, %v2606
  %v2609 = vsel %vm136, %v2607, 0.0
  %2610 = vadd.xlane.f32.xlu0 %v2609
  %v2611 = vpop.xlane.xlu0 %2610
  %v2612 = vsel %vm136, %v2608, 0.0
  %2613 = vadd.xlane.f32.xlu0 %v2612
  %v2614 = vpop.xlane.xlu0 %2613
  %v2615 = vmul.f32 %v2611, %v2602
  %v2616 = vmul.f32 %v2614, %v2602
  %v2617 = vadd.f32 %v2615, 1e-05
  %v2618 = vadd.f32 %v2616, 1e-05
  %v2619 = vrsqrt.pop %v2617
  %v2620 = vrsqrt.pop %v2618
  %v2621 = vmul.f32 %v2605, %v2619
  %v2622 = vmul.f32 %v2606, %v2620
  %v2623 = vlaneseq
  %v2624 = vshrl.u32 %v2623, 7
  %v2625 = vsub.s32 0, %v2624
  %v2626 = vrot.slane %v33, %v2625
  %v2627 = vmul.f32 %v2621, %v2626
  %v2628 = vmul.f32 %v2622, %v2626
  %v2629 = vlaneseq
  %v2630 = vshrl.u32 %v2629, 7
  %v2631 = vsub.s32 0, %v2630
  %v2632 = vrot.slane %v34, %v2631
  %v2633 = vadd.f32 %v2627, %v2632
  %v2634 = vadd.f32 %v2628, %v2632
  %2635 = vst.msk [vmem:[%s5] sm:$0xff] %vm136, %v2633
  %2637 = vrot.lane.b32.xlu0 %v2634, 32
  %v2638 = vpop.permute.xlu0 %2637
  %vm2640 = vcmask 523520
  %2641 = vst.msk [vmem:[%s5] sm:$0xff] %vm2640, %v2638
  // Predicated region
  $region22: #{rel_partial_mha_forward.1} parent=0 // pred_check
    _
  $region23: #{rel_partial_mha_forward.1} parent=0 // pred_check_branch
    %2643 = sbr.rel (0) target = $region25
  $region24: #{rel_partial_mha_forward.1} parent=0 // pred_region
    _
  $region25: #{rel_partial_mha_forward.1} parent=0 // pred_fallthru
    _
  // Predicated region
  $region26: #{rel_partial_mha_forward.1} parent=0 // pred_check
    _
  $region27: #{rel_partial_mha_forward.1} parent=0 // pred_check_branch
    %2645 = sbr.rel (0) target = $region29
  $region28: #{rel_partial_mha_forward.1} parent=0 // pred_region
    _
  $region29: #{rel_partial_mha_forward.1} parent=0 // pred_fallthru
    _

</llo_original>
